<compile_context>
chip_gen: v6e
topology: v6e:2x2x1
jax: 0.10.0
libtpu: 0.0.40
codegen_flags: <defaults>
</compile_context>

<pallas_src>
import functools

import jax
import jax.numpy as jnp
from jax.experimental import pallas as pl
from jax.experimental.pallas import tpu as pltpu


def tonemapper_kernel(x_ref, w1_ref, b1_ref, w2_ref, b2_ref, w3_ref, b3_ref,
                      out_ref, s_ref, *, H, W):
    # x_ref : [1, Cin, (H+3)*(W+2)]  spatially zero-padded input, row-major flattened
    # wK_ref: [CoutK, 9*CinK]        im2col weights, column index = (ky*3+kx)*CinK + ci
    # bK_ref: [CoutK, 1]
    # out_ref: [1, Cout, H*(W+2)]    padded-width output (wrap columns dropped outside)
    # s_ref : [Ch, (H+3)*(W+2)]      padded hidden activations (reused by all layers)
    Wp = W + 2
    HWp = H * Wp
    Ch = s_ref.shape[0]

    # Mask that zeroes the 2 wrap/garbage columns of each padded row; it doubles as the
    # left/right zero-padding of the next layer's input.
    col = jax.lax.broadcasted_iota(jnp.int32, (1, HWp), 1) % Wp
    mask = (col < W).astype(jnp.float32)

    def conv3x3(src, w, b):
        # src: [C, >= HWp + 2*Wp + 2]; single matmul, 9 taps fused into K = 9*C.
        slabs = [src[:, (ky * Wp + kx):(ky * Wp + kx) + HWp]
                 for ky in range(3) for kx in range(3)]
        patch = jnp.concatenate(slabs, axis=0)                    # [9*C, HWp]
        return jnp.dot(w, patch, preferred_element_type=jnp.float32) + b

    # Zero only the scratch halo (top row + left col of row 1, bottom pad rows);
    # interior left/right borders come from the mask multiply below.
    s_ref[:, 0:Wp + 1] = jnp.zeros((Ch, Wp + 1), jnp.float32)
    s_ref[:, (H + 1) * Wp + 1:(H + 3) * Wp] = jnp.zeros((Ch, 2 * Wp - 1), jnp.float32)

    # ---- layer 1: conv + ReLU ----
    y1 = conv3x3(x_ref[0], w1_ref[...], b1_ref[...])
    s_ref[:, Wp + 1:Wp + 1 + HWp] = jnp.maximum(y1, 0.0) * mask

    # ---- layer 2: conv + ReLU (reads, then overwrites, the same scratch) ----
    y2 = conv3x3(s_ref[...], w2_ref[...], b2_ref[...])
    s_ref[:, Wp + 1:Wp + 1 + HWp] = jnp.maximum(y2, 0.0) * mask

    # ---- layer 3: conv (no activation) ----
    y3 = conv3x3(s_ref[...], w3_ref[...], b3_ref[...])
    out_ref[0] = y3.astype(out_ref.dtype)


@jax.jit
def tonemapper_rgb_combine(x_nchw, params_flat):
    """Fused Pallas forward.  x_nchw: [N, Cin, H, W] float32 -> [N, Cout, H, W]."""
    w1, b1, w2, b2, w3, b3 = params_flat
    N, Cin, H, W = x_nchw.shape
    Ch = w1.shape[0]
    Cout = w3.shape[0]
    Wp = W + 2
    Lp = (H + 3) * Wp   # 1 top pad row + 2 bottom pad rows (1 extra for flat-slice safety)

    # NCHW spatial zero-pad (no transposes); flattening spatial is a free reshape.
    xp = jnp.pad(x_nchw, ((0, 0), (0, 0), (1, 2), (1, 1)))
    xf = xp.reshape(N, Cin, Lp)

    kernel = functools.partial(tonemapper_kernel, H=H, W=W)

    out_flat = pl.pallas_call(
        kernel,
        out_shape=jax.ShapeDtypeStruct((N, Cout, H * Wp), x_nchw.dtype),
        grid=(N,),
        in_specs=[
            pl.BlockSpec((1, Cin, Lp), lambda n: (n, 0, 0)),   # streamed per image
            pl.BlockSpec((Ch, 9 * Cin), lambda n: (0, 0)),     # resident weights/biases
            pl.BlockSpec((Ch, 1), lambda n: (0, 0)),
            pl.BlockSpec((Ch, 9 * Ch), lambda n: (0, 0)),
            pl.BlockSpec((Ch, 1), lambda n: (0, 0)),
            pl.BlockSpec((Cout, 9 * Ch), lambda n: (0, 0)),
            pl.BlockSpec((Cout, 1), lambda n: (0, 0)),
        ],
        out_specs=pl.BlockSpec((1, Cout, H * Wp), lambda n: (n, 0, 0)),
        scratch_shapes=[pltpu.VMEM((Ch, Lp), jnp.float32)],
        compiler_params=pltpu.CompilerParams(
            dimension_semantics=("parallel",),
            vmem_limit_bytes=32 * 1024 * 1024,
        ),
    )(xf, w1, b1, w2, b2, w3, b3)

    # Drop the 2 padded-width columns of each row: [N, Cout, H, Wp] -> [..., :W].
    return out_flat.reshape(N, Cout, H, Wp)[:, :, :, :W]


def init_params(key, in_channel=3, hidden_channel=16):
    """Deterministic PyTorch-style (uniform +-1/sqrt(fan_in)) conv params.

    Returns kernel-layout params ([cout, 9*cin] weights, [cout, 1] biases) plus HWIO
    weights for the lax.conv reference.
    """
    chans = [(in_channel, hidden_channel),
             (hidden_channel, hidden_channel),
             (hidden_channel, in_channel)]
    keys = jax.random.split(key, 2 * len(chans))
    flat_params, hwio_params = [], []
    for li, (cin, cout) in enumerate(chans):
        bound = 1.0 / jnp.sqrt(cin * 9.0)
        w_hwio = jax.random.uniform(keys[2 * li], (3, 3, cin, cout),
                                    jnp.float32, -bound, bound)
        b = jax.random.uniform(keys[2 * li + 1], (cout,),
                               jnp.float32, -bound, bound)
        # kernel layout: [cout, 9*cin], column = (ky*3 + kx)*cin + ci
        w_mat = jnp.transpose(w_hwio, (3, 0, 1, 2)).reshape(cout, 9 * cin)
        flat_params += [w_mat, b.reshape(cout, 1)]
        hwio_params.append((w_hwio, b.reshape(1, cout)))
    return tuple(flat_params), hwio_params


def reference_forward(x_nchw, hwio_params):
    """Pure-JAX reference (matches PyTorch nn.Conv2d semantics)."""
    x = jnp.transpose(x_nchw, (0, 2, 3, 1))

    def conv(h, w, b):
        y = jax.lax.conv_general_dilated(
            h, w, window_strides=(1, 1), padding="SAME",
            dimension_numbers=("NHWC", "HWIO", "NHWC"))
        return y + b  # b: (1, cout) broadcasts over NHWC

    (w1, b1), (w2, b2), (w3, b3) = hwio_params
    h = jax.nn.relu(conv(x, w1, b1))
    h = jax.nn.relu(conv(h, w2, b2))
    y = conv(h, w3, b3)
    return jnp.transpose(y, (0, 3, 1, 2))


if __name__ == "__main__":
    key = jax.random.PRNGKey(0)
    kx, kp = jax.random.split(key)

    # small NCHW input consistent with the module defaults (in_channel=3)
    x = jax.random.normal(kx, (2, 3, 16, 16), jnp.float32)
    params_flat, params_hwio = init_params(kp, in_channel=3, hidden_channel=16)

    y = jax.block_until_ready(tonemapper_rgb_combine(x, params_flat))
    y_ref = jax.block_until_ready(reference_forward(x, params_hwio))

    assert y.shape == (2, 3, 16, 16), y.shape
    max_err = float(jnp.max(jnp.abs(y - y_ref)))
    assert jnp.allclose(y, y_ref, atol=1e-4, rtol=1e-4), max_err

    print("KERNEL_OK")
</pallas_src>

<mosaic_0001>
module attributes {stable_mosaic.version = 11 : i64} {
  func.func @tonemapper_kernel(%arg0: i32, %arg1: memref<1x3x342xf32, #tpu.memory_space<vmem>>, %arg2: memref<16x27xf32, #tpu.memory_space<vmem>>, %arg3: memref<16x1xf32, #tpu.memory_space<vmem>>, %arg4: memref<16x144xf32, #tpu.memory_space<vmem>>, %arg5: memref<16x1xf32, #tpu.memory_space<vmem>>, %arg6: memref<3x144xf32, #tpu.memory_space<vmem>>, %arg7: memref<3x1xf32, #tpu.memory_space<vmem>>, %arg8: memref<1x3x288xf32, #tpu.memory_space<vmem>>, %arg9: memref<16x342xf32, #tpu.memory_space<vmem>>) attributes {dimension_semantics = [#tpu.dimension_semantics<parallel>], iteration_bounds = array<i64: 2>, scalar_prefetch = 0 : i64, scratch_operands = 1 : i64, tpu.core_type = #tpu.core_type<tc>, window_params = [{transform_indices = @transform_0, window_bounds = array<i64: 1, 3, 342>}, {pipeline_mode = #tpu.pipeline_mode<synchronous>, transform_indices = @transform_1, window_bounds = array<i64: 16, 27>}, {pipeline_mode = #tpu.pipeline_mode<synchronous>, transform_indices = @transform_2, window_bounds = array<i64: 16, 1>}, {pipeline_mode = #tpu.pipeline_mode<synchronous>, transform_indices = @transform_3, window_bounds = array<i64: 16, 144>}, {pipeline_mode = #tpu.pipeline_mode<synchronous>, transform_indices = @transform_4, window_bounds = array<i64: 16, 1>}, {pipeline_mode = #tpu.pipeline_mode<synchronous>, transform_indices = @transform_5, window_bounds = array<i64: 3, 144>}, {pipeline_mode = #tpu.pipeline_mode<synchronous>, transform_indices = @transform_6, window_bounds = array<i64: 3, 1>}, {transform_indices = @transform_7, window_bounds = array<i64: 1, 3, 288>}]} {
    %0 = tpu.iota {dimensions = array<i32: 1>} : vector<1x288xi32>
    %c18_i32 = arith.constant 18 : i32
    %c0_i32 = arith.constant 0 : i32
    %1 = arith.cmpi eq, %c18_i32, %c0_i32 : i32
    %c1_i32 = arith.constant 1 : i32
    %2 = arith.select %1, %c1_i32, %c18_i32 : i32
    %3 = vector.broadcast %2 : i32 to vector<1x288xi32>
    %4 = arith.remsi %0, %3 : vector<1x288xi32>
    %c0_i32_0 = arith.constant 0 : i32
    %5 = vector.broadcast %c0_i32_0 : i32 to vector<1x288xi32>
    %6 = arith.cmpi ne, %4, %5 : vector<1x288xi32>
    %c0_i32_1 = arith.constant 0 : i32
    %7 = vector.broadcast %c0_i32_1 : i32 to vector<1x288xi32>
    %8 = arith.cmpi slt, %4, %7 : vector<1x288xi32>
    %c0_i32_2 = arith.constant 0 : i32
    %9 = arith.cmpi slt, %2, %c0_i32_2 : i32
    %10 = vector.broadcast %9 : i1 to vector<1x288xi1>
    %11 = vector.broadcast %10 : vector<1x288xi1> to vector<1x288xi1>
    %12 = arith.xori %8, %11 : vector<1x288xi1>
    %13 = arith.andi %12, %6 : vector<1x288xi1>
    %14 = vector.broadcast %2 : i32 to vector<1x288xi32>
    %15 = arith.addi %4, %14 : vector<1x288xi32>
    %16 = arith.select %13, %15, %4 : vector<1x288xi1>, vector<1x288xi32>
    %c16_i32 = arith.constant 16 : i32
    %17 = vector.broadcast %c16_i32 : i32 to vector<1x288xi32>
    %18 = arith.cmpi slt, %16, %17 : vector<1x288xi32>
    %19 = arith.extui %18 : vector<1x288xi1> to vector<1x288xi32>
    %20 = arith.sitofp %19 : vector<1x288xi32> to vector<1x288xf32>
    %cst = arith.constant 0.000000e+00 : f32
    %21 = vector.broadcast %cst : f32 to vector<16x19xf32>
    %c0 = arith.constant 0 : index
    %c0_3 = arith.constant 0 : index
    %22 = vector.load %arg9[%c0, %c0_3] : memref<16x342xf32, #tpu.memory_space<vmem>>, vector<16x19xf32>
    tpu.vector_store %arg9[%c0, %c0_3], %21 {strides = array<i32>} : memref<16x342xf32, #tpu.memory_space<vmem>>, vector<16x19xf32>,
    %cst_4 = arith.constant 0.000000e+00 : f32
    %23 = vector.broadcast %cst_4 : f32 to vector<16x35xf32>
    %c0_5 = arith.constant 0 : index
    %c307 = arith.constant 307 : index
    %24 = vector.load %arg9[%c0_5, %c307] : memref<16x342xf32, #tpu.memory_space<vmem>>, vector<16x35xf32>
    tpu.vector_store %arg9[%c0_5, %c307], %23 {strides = array<i32>} : memref<16x342xf32, #tpu.memory_space<vmem>>, vector<16x35xf32>,
    %c0_6 = arith.constant 0 : index
    %c0_7 = arith.constant 0 : index
    %c0_8 = arith.constant 0 : index
    %25 = vector.load %arg1[%c0_6, %c0_7, %c0_8] : memref<1x3x342xf32, #tpu.memory_space<vmem>>, vector<1x3x342xf32>
    %26 = vector.shape_cast %25 : vector<1x3x342xf32> to vector<3x342xf32>
    %c0_9 = arith.constant 0 : index
    %c0_10 = arith.constant 0 : index
    %27 = vector.load %arg2[%c0_9, %c0_10] : memref<16x27xf32, #tpu.memory_space<vmem>>, vector<16x27xf32>
    %c0_11 = arith.constant 0 : index
    %c0_12 = arith.constant 0 : index
    %28 = vector.load %arg3[%c0_11, %c0_12] : memref<16x1xf32, #tpu.memory_space<vmem>>, vector<16x1xf32>
    %29 = vector.extract_strided_slice %26 {offsets = [0, 0], sizes = [3, 288], strides = [1, 1]} : vector<3x342xf32> to vector<3x288xf32>
    %30 = vector.extract_strided_slice %26 {offsets = [0, 1], sizes = [3, 288], strides = [1, 1]} : vector<3x342xf32> to vector<3x288xf32>
    %31 = vector.extract_strided_slice %26 {offsets = [0, 2], sizes = [3, 288], strides = [1, 1]} : vector<3x342xf32> to vector<3x288xf32>
    %32 = vector.extract_strided_slice %26 {offsets = [0, 18], sizes = [3, 288], strides = [1, 1]} : vector<3x342xf32> to vector<3x288xf32>
    %33 = vector.extract_strided_slice %26 {offsets = [0, 19], sizes = [3, 288], strides = [1, 1]} : vector<3x342xf32> to vector<3x288xf32>
    %34 = vector.extract_strided_slice %26 {offsets = [0, 20], sizes = [3, 288], strides = [1, 1]} : vector<3x342xf32> to vector<3x288xf32>
    %35 = vector.extract_strided_slice %26 {offsets = [0, 36], sizes = [3, 288], strides = [1, 1]} : vector<3x342xf32> to vector<3x288xf32>
    %36 = vector.extract_strided_slice %26 {offsets = [0, 37], sizes = [3, 288], strides = [1, 1]} : vector<3x342xf32> to vector<3x288xf32>
    %37 = vector.extract_strided_slice %26 {offsets = [0, 38], sizes = [3, 288], strides = [1, 1]} : vector<3x342xf32> to vector<3x288xf32>
    %38 = tpu.concatenate %29, %30, %31, %32, %33, %34, %35, %36, %37 in 0 : vector<3x288xf32>, vector<3x288xf32>, vector<3x288xf32>, vector<3x288xf32>, vector<3x288xf32>, vector<3x288xf32>, vector<3x288xf32>, vector<3x288xf32>, vector<3x288xf32> -> vector<27x288xf32>
    %cst_13 = arith.constant dense<0.000000e+00> : vector<16x288xf32>
    %39 = tpu.matmul %27, %38, %cst_13 {dimension_numbers = #tpu.dot_dimension_numbers<[1], [0], [0], [1], [0, 0, 1, 1], [], []>} : vector<16x27xf32>, vector<27x288xf32>, vector<16x288xf32> -> vector<16x288xf32>
    %40 = vector.broadcast %28 : vector<16x1xf32> to vector<16x288xf32>
    %41 = arith.addf %39, %40 : vector<16x288xf32>
    %cst_14 = arith.constant 0.000000e+00 : f32
    %42 = vector.broadcast %cst_14 : f32 to vector<16x288xf32>
    %43 = arith.maximumf %41, %42 : vector<16x288xf32>
    %44 = vector.broadcast %20 : vector<1x288xf32> to vector<16x288xf32>
    %45 = arith.mulf %43, %44 : vector<16x288xf32>
    %c0_15 = arith.constant 0 : index
    %c19 = arith.constant 19 : index
    %46 = vector.load %arg9[%c0_15, %c19] : memref<16x342xf32, #tpu.memory_space<vmem>>, vector<16x288xf32>
    tpu.vector_store %arg9[%c0_15, %c19], %45 {strides = array<i32>} : memref<16x342xf32, #tpu.memory_space<vmem>>, vector<16x288xf32>,
    %c0_16 = arith.constant 0 : index
    %c0_17 = arith.constant 0 : index
    %47 = vector.load %arg9[%c0_16, %c0_17] : memref<16x342xf32, #tpu.memory_space<vmem>>, vector<16x342xf32>
    %c0_18 = arith.constant 0 : index
    %c0_19 = arith.constant 0 : index
    %48 = vector.load %arg4[%c0_18, %c0_19] : memref<16x144xf32, #tpu.memory_space<vmem>>, vector<16x144xf32>
    %c0_20 = arith.constant 0 : index
    %c0_21 = arith.constant 0 : index
    %49 = vector.load %arg5[%c0_20, %c0_21] : memref<16x1xf32, #tpu.memory_space<vmem>>, vector<16x1xf32>
    %50 = vector.extract_strided_slice %47 {offsets = [0, 0], sizes = [16, 288], strides = [1, 1]} : vector<16x342xf32> to vector<16x288xf32>
    %51 = vector.extract_strided_slice %47 {offsets = [0, 1], sizes = [16, 288], strides = [1, 1]} : vector<16x342xf32> to vector<16x288xf32>
    %52 = vector.extract_strided_slice %47 {offsets = [0, 2], sizes = [16, 288], strides = [1, 1]} : vector<16x342xf32> to vector<16x288xf32>
    %53 = vector.extract_strided_slice %47 {offsets = [0, 18], sizes = [16, 288], strides = [1, 1]} : vector<16x342xf32> to vector<16x288xf32>
    %54 = vector.extract_strided_slice %47 {offsets = [0, 19], sizes = [16, 288], strides = [1, 1]} : vector<16x342xf32> to vector<16x288xf32>
    %55 = vector.extract_strided_slice %47 {offsets = [0, 20], sizes = [16, 288], strides = [1, 1]} : vector<16x342xf32> to vector<16x288xf32>
    %56 = vector.extract_strided_slice %47 {offsets = [0, 36], sizes = [16, 288], strides = [1, 1]} : vector<16x342xf32> to vector<16x288xf32>
    %57 = vector.extract_strided_slice %47 {offsets = [0, 37], sizes = [16, 288], strides = [1, 1]} : vector<16x342xf32> to vector<16x288xf32>
    %58 = vector.extract_strided_slice %47 {offsets = [0, 38], sizes = [16, 288], strides = [1, 1]} : vector<16x342xf32> to vector<16x288xf32>
    %59 = tpu.concatenate %50, %51, %52, %53, %54, %55, %56, %57, %58 in 0 : vector<16x288xf32>, vector<16x288xf32>, vector<16x288xf32>, vector<16x288xf32>, vector<16x288xf32>, vector<16x288xf32>, vector<16x288xf32>, vector<16x288xf32>, vector<16x288xf32> -> vector<144x288xf32>
    %cst_22 = arith.constant dense<0.000000e+00> : vector<16x288xf32>
    %60 = tpu.matmul %48, %59, %cst_22 {dimension_numbers = #tpu.dot_dimension_numbers<[1], [0], [0], [1], [0, 0, 1, 1], [], []>} : vector<16x144xf32>, vector<144x288xf32>, vector<16x288xf32> -> vector<16x288xf32>
    %61 = vector.broadcast %49 : vector<16x1xf32> to vector<16x288xf32>
    %62 = arith.addf %60, %61 : vector<16x288xf32>
    %cst_23 = arith.constant 0.000000e+00 : f32
    %63 = vector.broadcast %cst_23 : f32 to vector<16x288xf32>
    %64 = arith.maximumf %62, %63 : vector<16x288xf32>
    %65 = vector.broadcast %20 : vector<1x288xf32> to vector<16x288xf32>
    %66 = arith.mulf %64, %65 : vector<16x288xf32>
    %c0_24 = arith.constant 0 : index
    %c19_25 = arith.constant 19 : index
    %67 = vector.load %arg9[%c0_24, %c19_25] : memref<16x342xf32, #tpu.memory_space<vmem>>, vector<16x288xf32>
    tpu.vector_store %arg9[%c0_24, %c19_25], %66 {strides = array<i32>} : memref<16x342xf32, #tpu.memory_space<vmem>>, vector<16x288xf32>,
    %c0_26 = arith.constant 0 : index
    %c0_27 = arith.constant 0 : index
    %68 = vector.load %arg9[%c0_26, %c0_27] : memref<16x342xf32, #tpu.memory_space<vmem>>, vector<16x342xf32>
    %c0_28 = arith.constant 0 : index
    %c0_29 = arith.constant 0 : index
    %69 = vector.load %arg6[%c0_28, %c0_29] : memref<3x144xf32, #tpu.memory_space<vmem>>, vector<3x144xf32>
    %c0_30 = arith.constant 0 : index
    %c0_31 = arith.constant 0 : index
    %70 = vector.load %arg7[%c0_30, %c0_31] : memref<3x1xf32, #tpu.memory_space<vmem>>, vector<3x1xf32>
    %71 = vector.extract_strided_slice %68 {offsets = [0, 0], sizes = [16, 288], strides = [1, 1]} : vector<16x342xf32> to vector<16x288xf32>
    %72 = vector.extract_strided_slice %68 {offsets = [0, 1], sizes = [16, 288], strides = [1, 1]} : vector<16x342xf32> to vector<16x288xf32>
    %73 = vector.extract_strided_slice %68 {offsets = [0, 2], sizes = [16, 288], strides = [1, 1]} : vector<16x342xf32> to vector<16x288xf32>
    %74 = vector.extract_strided_slice %68 {offsets = [0, 18], sizes = [16, 288], strides = [1, 1]} : vector<16x342xf32> to vector<16x288xf32>
    %75 = vector.extract_strided_slice %68 {offsets = [0, 19], sizes = [16, 288], strides = [1, 1]} : vector<16x342xf32> to vector<16x288xf32>
    %76 = vector.extract_strided_slice %68 {offsets = [0, 20], sizes = [16, 288], strides = [1, 1]} : vector<16x342xf32> to vector<16x288xf32>
    %77 = vector.extract_strided_slice %68 {offsets = [0, 36], sizes = [16, 288], strides = [1, 1]} : vector<16x342xf32> to vector<16x288xf32>
    %78 = vector.extract_strided_slice %68 {offsets = [0, 37], sizes = [16, 288], strides = [1, 1]} : vector<16x342xf32> to vector<16x288xf32>
    %79 = vector.extract_strided_slice %68 {offsets = [0, 38], sizes = [16, 288], strides = [1, 1]} : vector<16x342xf32> to vector<16x288xf32>
    %80 = tpu.concatenate %71, %72, %73, %74, %75, %76, %77, %78, %79 in 0 : vector<16x288xf32>, vector<16x288xf32>, vector<16x288xf32>, vector<16x288xf32>, vector<16x288xf32>, vector<16x288xf32>, vector<16x288xf32>, vector<16x288xf32>, vector<16x288xf32> -> vector<144x288xf32>
    %cst_32 = arith.constant dense<0.000000e+00> : vector<3x288xf32>
    %81 = tpu.matmul %69, %80, %cst_32 {dimension_numbers = #tpu.dot_dimension_numbers<[1], [0], [0], [1], [0, 0, 1, 1], [], []>} : vector<3x144xf32>, vector<144x288xf32>, vector<3x288xf32> -> vector<3x288xf32>
    %82 = vector.broadcast %70 : vector<3x1xf32> to vector<3x288xf32>
    %83 = arith.addf %81, %82 : vector<3x288xf32>
    %c0_33 = arith.constant 0 : index
    %c0_34 = arith.constant 0 : index
    %c0_35 = arith.constant 0 : index
    %84 = vector.load %arg8[%c0_33, %c0_34, %c0_35] : memref<1x3x288xf32, #tpu.memory_space<vmem>>, vector<1x3x288xf32>
    %85 = vector.shape_cast %84 : vector<1x3x288xf32> to vector<3x288xf32>
    %86 = vector.shape_cast %83 : vector<3x288xf32> to vector<1x3x288xf32>
    tpu.vector_store %arg8[%c0_33, %c0_34, %c0_35], %86 {strides = array<i32>} : memref<1x3x288xf32, #tpu.memory_space<vmem>>, vector<1x3x288xf32>,
    return
  }
  func.func @transform_0(%arg0: i32) -> (i32, i32, i32) {
    %c0_i32 = arith.constant 0 : i32
    %c0_i32_0 = arith.constant 0 : i32
    %c0_i32_1 = arith.constant 0 : i32
    return %arg0, %c0_i32, %c0_i32_0 : i32, i32, i32
  }
  func.func @transform_1(%arg0: i32) -> (i32, i32) {
    %c0_i32 = arith.constant 0 : i32
    %c0_i32_0 = arith.constant 0 : i32
    %c0_i32_1 = arith.constant 0 : i32
    return %c0_i32, %c0_i32_0 : i32, i32
  }
  func.func @transform_2(%arg0: i32) -> (i32, i32) {
    %c0_i32 = arith.constant 0 : i32
    %c0_i32_0 = arith.constant 0 : i32
    %c0_i32_1 = arith.constant 0 : i32
    return %c0_i32, %c0_i32_0 : i32, i32
  }
  func.func @transform_3(%arg0: i32) -> (i32, i32) {
    %c0_i32 = arith.constant 0 : i32
    %c0_i32_0 = arith.constant 0 : i32
    %c0_i32_1 = arith.constant 0 : i32
    return %c0_i32, %c0_i32_0 : i32, i32
  }
  func.func @transform_4(%arg0: i32) -> (i32, i32) {
    %c0_i32 = arith.constant 0 : i32
    %c0_i32_0 = arith.constant 0 : i32
    %c0_i32_1 = arith.constant 0 : i32
    return %c0_i32, %c0_i32_0 : i32, i32
  }
  func.func @transform_5(%arg0: i32) -> (i32, i32) {
    %c0_i32 = arith.constant 0 : i32
    %c0_i32_0 = arith.constant 0 : i32
    %c0_i32_1 = arith.constant 0 : i32
    return %c0_i32, %c0_i32_0 : i32, i32
  }
  func.func @transform_6(%arg0: i32) -> (i32, i32) {
    %c0_i32 = arith.constant 0 : i32
    %c0_i32_0 = arith.constant 0 : i32
    %c0_i32_1 = arith.constant 0 : i32
    return %c0_i32, %c0_i32_0 : i32, i32
  }
  func.func @transform_7(%arg0: i32) -> (i32, i32, i32) {
    %c0_i32 = arith.constant 0 : i32
    %c0_i32_0 = arith.constant 0 : i32
    %c0_i32_1 = arith.constant 0 : i32
    return %arg0, %c0_i32, %c0_i32_0 : i32, i32, i32
  }
}

</mosaic_0001>

<llo_original>
// kernel: tonemapper_rgb_combine.1
$region0: #{tonemapper_rgb_combine.1}
  #allocation0 [shape = 'u32[]', space=smem, size = 0x4, offset = 0x4, fixed_abs, tag = 'smem constant byte address 0x4 - core index']
  #allocation1 [shape = 'u32[144,128]{1,0:T(1,128)}', space=vmem, size = 0x12000, scoped, tag = 'internal scratch']
  #allocation2 [shape = 'f32[16,342]{1,0:T(8,128)}', space=vmem, size = 0x6000, scoped, tag = 'scratch operand']
  %s0 = inlined_call_operand.vmem [shape: f32[2,3,342], index: 0, kind: input, shape index: {}]
  %s1 = inlined_call_operand.vmem [shape: f32[16,27], index: 1, kind: input, shape index: {}]
  %s2 = inlined_call_operand.vmem [shape: f32[16,1], index: 2, kind: input, shape index: {}]
  %s3 = inlined_call_operand.vmem [shape: f32[16,144], index: 3, kind: input, shape index: {}]
  %s4 = inlined_call_operand.vmem [shape: f32[16,1], index: 4, kind: input, shape index: {}]
  %s5 = inlined_call_operand.vmem [shape: f32[3,144], index: 5, kind: input, shape index: {}]
  %s6 = inlined_call_operand.vmem [shape: f32[3,1], index: 6, kind: input, shape index: {}]
  %s7 = inlined_call_operand.vmem [shape: f32[2,3,288], index: 7, kind: output, shape index: {}]
  %s8 = sld [smem:[#allocation0]]
  $region61: #{tonemapper_rgb_combine.1} parent=0
    _
  %s10 = ssub.s32 1, %s8
  %s11 = scalar_select 0, %s10, %s8
  loop: start=0, step=1, limit=4
  $region2: #{tonemapper_rgb_combine.1} parent=0 // loop_pre_header
    _
  $region3: #{tonemapper_rgb_combine.1} parent=0 // loop_header
    %s13 = sphi 0, %s17
    %p14 = scmp.ge.s32.totalorder %s13, 4
    %s23 = sphi 0, %s25
    %s26 = sphi 0, %s23
    %s27 = sphi 0, %s26
    %s43 = sphi 0, %s27
    %s47 = sphi 0, %s47
    %s49 = sphi 0, %s47
    %s50 = sphi 0, %s49
    %s64 = sphi 0, %s50
    %s68 = sphi 0, %s68
    %s70 = sphi 0, %s68
    %s71 = sphi 0, %s70
    %s85 = sphi 0, %s71
    %s89 = sphi 0, %s89
    %s91 = sphi 0, %s89
    %s92 = sphi 0, %s91
    %s106 = sphi 0, %s92
    %s110 = sphi 0, %s110
    %s112 = sphi 0, %s110
    %s113 = sphi 0, %s112
    %s127 = sphi 0, %s113
    %s131 = sphi 0, %s131
    %s133 = sphi 0, %s131
    %s134 = sphi 0, %s133
    %s148 = sphi 0, %s134
    %s152 = sphi 0, %s152
    %s154 = sphi 0, %s152
    %s155 = sphi 0, %s154
    %s169 = sphi 0, %s155
    %s175 = sphi 0, %s177
    %s178 = sphi 0, %s175
    %s179 = sphi 0, %s178
    %s195 = sphi 0, %s179
  $region4: #{tonemapper_rgb_combine.1} parent=0 // loop_header_branch
    %16 = sbr.rel (%p14) target = $region8
  $region5: #{tonemapper_rgb_combine.1} parent=0 // loop_body
    %s18 = ssub.s32 %s13, 1
    %s19 = ssub.s32 %s13, 2
    %s20 = sadd.s32 %s13, 1
    %s21 = ssub.s32 %s13, %s20
    %p22 = scmp.eq.s32.totalorder %s21, 0
    %s24 = sadd.s32 %s23, 1
    %s25 = scalar_select %p22, %s23, %s24
    %p28 = pneg %p22
    %p29 = scmp.eq.s32.totalorder %s13, 1
    %p30 = por %p28, %p29
    %p31 = scmp.ne.s32.totalorder %s23, %s26
    %p32 = scmp.eq.s32.totalorder %s13, 0
    %p33 = por %p31, %p32
    %p34 = scmp.ne.s32.totalorder %s23, %s26
    %p35 = scmp.eq.s32.totalorder %s18, 1
    %p36 = por %p34, %p35
    %p37 = scmp.ne.s32.totalorder %s26, %s27
    %p38 = scmp.eq.s32.totalorder %s18, 0
    %p39 = por %p37, %p38
    %p40 = scmp.ne.s32.totalorder %s26, %s27
    %p41 = scmp.eq.s32.totalorder %s19, 1
    %p42 = por %p40, %p41
    %p44 = scmp.ne.s32.totalorder %s27, %s43
    %p45 = scmp.eq.s32.totalorder %s19, 0
    %p46 = por %p44, %p45
    %s48 = sadd.s32 %s47, 1
    %p51 = scmp.eq.s32.totalorder %s13, 1
    %p52 = scmp.ne.s32.totalorder %s47, %s49
    %p53 = scmp.eq.s32.totalorder %s13, 0
    %p54 = por %p52, %p53
    %p55 = scmp.ne.s32.totalorder %s47, %s49
    %p56 = scmp.eq.s32.totalorder %s18, 1
    %p57 = por %p55, %p56
    %p58 = scmp.ne.s32.totalorder %s49, %s50
    %p59 = scmp.eq.s32.totalorder %s18, 0
    %p60 = por %p58, %p59
    %p61 = scmp.ne.s32.totalorder %s49, %s50
    %p62 = scmp.eq.s32.totalorder %s19, 1
    %p63 = por %p61, %p62
    %p65 = scmp.ne.s32.totalorder %s50, %s64
    %p66 = scmp.eq.s32.totalorder %s19, 0
    %p67 = por %p65, %p66
    %s69 = sadd.s32 %s68, 1
    %p72 = scmp.eq.s32.totalorder %s13, 1
    %p73 = scmp.ne.s32.totalorder %s68, %s70
    %p74 = scmp.eq.s32.totalorder %s13, 0
    %p75 = por %p73, %p74
    %p76 = scmp.ne.s32.totalorder %s68, %s70
    %p77 = scmp.eq.s32.totalorder %s18, 1
    %p78 = por %p76, %p77
    %p79 = scmp.ne.s32.totalorder %s70, %s71
    %p80 = scmp.eq.s32.totalorder %s18, 0
    %p81 = por %p79, %p80
    %p82 = scmp.ne.s32.totalorder %s70, %s71
    %p83 = scmp.eq.s32.totalorder %s19, 1
    %p84 = por %p82, %p83
    %p86 = scmp.ne.s32.totalorder %s71, %s85
    %p87 = scmp.eq.s32.totalorder %s19, 0
    %p88 = por %p86, %p87
    %s90 = sadd.s32 %s89, 1
    %p93 = scmp.eq.s32.totalorder %s13, 1
    %p94 = scmp.ne.s32.totalorder %s89, %s91
    %p95 = scmp.eq.s32.totalorder %s13, 0
    %p96 = por %p94, %p95
    %p97 = scmp.ne.s32.totalorder %s89, %s91
    %p98 = scmp.eq.s32.totalorder %s18, 1
    %p99 = por %p97, %p98
    %p100 = scmp.ne.s32.totalorder %s91, %s92
    %p101 = scmp.eq.s32.totalorder %s18, 0
    %p102 = por %p100, %p101
    %p103 = scmp.ne.s32.totalorder %s91, %s92
    %p104 = scmp.eq.s32.totalorder %s19, 1
    %p105 = por %p103, %p104
    %p107 = scmp.ne.s32.totalorder %s92, %s106
    %p108 = scmp.eq.s32.totalorder %s19, 0
    %p109 = por %p107, %p108
    %s111 = sadd.s32 %s110, 1
    %p114 = scmp.eq.s32.totalorder %s13, 1
    %p115 = scmp.ne.s32.totalorder %s110, %s112
    %p116 = scmp.eq.s32.totalorder %s13, 0
    %p117 = por %p115, %p116
    %p118 = scmp.ne.s32.totalorder %s110, %s112
    %p119 = scmp.eq.s32.totalorder %s18, 1
    %p120 = por %p118, %p119
    %p121 = scmp.ne.s32.totalorder %s112, %s113
    %p122 = scmp.eq.s32.totalorder %s18, 0
    %p123 = por %p121, %p122
    %p124 = scmp.ne.s32.totalorder %s112, %s113
    %p125 = scmp.eq.s32.totalorder %s19, 1
    %p126 = por %p124, %p125
    %p128 = scmp.ne.s32.totalorder %s113, %s127
    %p129 = scmp.eq.s32.totalorder %s19, 0
    %p130 = por %p128, %p129
    %s132 = sadd.s32 %s131, 1
    %p135 = scmp.eq.s32.totalorder %s13, 1
    %p136 = scmp.ne.s32.totalorder %s131, %s133
    %p137 = scmp.eq.s32.totalorder %s13, 0
    %p138 = por %p136, %p137
    %p139 = scmp.ne.s32.totalorder %s131, %s133
    %p140 = scmp.eq.s32.totalorder %s18, 1
    %p141 = por %p139, %p140
    %p142 = scmp.ne.s32.totalorder %s133, %s134
    %p143 = scmp.eq.s32.totalorder %s18, 0
    %p144 = por %p142, %p143
    %p145 = scmp.ne.s32.totalorder %s133, %s134
    %p146 = scmp.eq.s32.totalorder %s19, 1
    %p147 = por %p145, %p146
    %p149 = scmp.ne.s32.totalorder %s134, %s148
    %p150 = scmp.eq.s32.totalorder %s19, 0
    %p151 = por %p149, %p150
    %s153 = sadd.s32 %s152, 1
    %p156 = scmp.eq.s32.totalorder %s13, 1
    %p157 = scmp.ne.s32.totalorder %s152, %s154
    %p158 = scmp.eq.s32.totalorder %s13, 0
    %p159 = por %p157, %p158
    %p160 = scmp.ne.s32.totalorder %s152, %s154
    %p161 = scmp.eq.s32.totalorder %s18, 1
    %p162 = por %p160, %p161
    %p163 = scmp.ne.s32.totalorder %s154, %s155
    %p164 = scmp.eq.s32.totalorder %s18, 0
    %p165 = por %p163, %p164
    %p166 = scmp.ne.s32.totalorder %s154, %s155
    %p167 = scmp.eq.s32.totalorder %s19, 1
    %p168 = por %p166, %p167
    %p170 = scmp.ne.s32.totalorder %s155, %s169
    %p171 = scmp.eq.s32.totalorder %s19, 0
    %p172 = por %p170, %p171
    %s173 = ssub.s32 %s13, %s20
    %p174 = scmp.eq.s32.totalorder %s173, 0
    %s176 = sadd.s32 %s175, 1
    %s177 = scalar_select %p174, %s175, %s176
    %p180 = pneg %p174
    %p181 = scmp.eq.s32.totalorder %s13, 1
    %p182 = por %p180, %p181
    %p183 = scmp.ne.s32.totalorder %s175, %s178
    %p184 = scmp.eq.s32.totalorder %s13, 0
    %p185 = por %p183, %p184
    %p186 = scmp.ne.s32.totalorder %s175, %s178
    %p187 = scmp.eq.s32.totalorder %s18, 1
    %p188 = por %p186, %p187
    %p189 = scmp.ne.s32.totalorder %s178, %s179
    %p190 = scmp.eq.s32.totalorder %s18, 0
    %p191 = por %p189, %p190
    %p192 = scmp.ne.s32.totalorder %s178, %s179
    %p193 = scmp.eq.s32.totalorder %s19, 1
    %p194 = por %p192, %p193
    %p196 = scmp.ne.s32.totalorder %s179, %s195
    %p197 = scmp.eq.s32.totalorder %s19, 0
    %p198 = por %p196, %p197
    %p199 = scmp.le.s32.totalorder 1, %s13
    %p200 = scmp.lt.s32.totalorder %s13, 3
    %p201 = pnand %p199, %p200
    %p202 = pneg %p201
    // Predicated region
    $region9: #{tonemapper_rgb_combine.1} parent=5 // pred_check
      _
    $region10: #{tonemapper_rgb_combine.1} parent=5 // pred_check_branch
      %204 = sbr.rel (%p201) target = $region12
    $region11: #{tonemapper_rgb_combine.1} parent=5 // pred_region
      %s205 = ssub.s32 %s13, 1
      // Predicated region
      $region13: #{tonemapper_rgb_combine.1} parent=11 // pred_check
        %p206 = pneg %p60
      $region14: #{tonemapper_rgb_combine.1} parent=11 // pred_check_branch
        %208 = sbr.rel (%p206) target = $region16
      $region15: #{tonemapper_rgb_combine.1} parent=11 // pred_region
        _
      $region16: #{tonemapper_rgb_combine.1} parent=11 // pred_fallthru
        _
      // Predicated region
      $region17: #{tonemapper_rgb_combine.1} parent=11 // pred_check
        %p209 = pneg %p81
      $region18: #{tonemapper_rgb_combine.1} parent=11 // pred_check_branch
        %211 = sbr.rel (%p209) target = $region20
      $region19: #{tonemapper_rgb_combine.1} parent=11 // pred_region
        _
      $region20: #{tonemapper_rgb_combine.1} parent=11 // pred_fallthru
        _
      // Predicated region
      $region21: #{tonemapper_rgb_combine.1} parent=11 // pred_check
        %p212 = pneg %p102
      $region22: #{tonemapper_rgb_combine.1} parent=11 // pred_check_branch
        %214 = sbr.rel (%p212) target = $region24
      $region23: #{tonemapper_rgb_combine.1} parent=11 // pred_region
        _
      $region24: #{tonemapper_rgb_combine.1} parent=11 // pred_fallthru
        _
      // Predicated region
      $region25: #{tonemapper_rgb_combine.1} parent=11 // pred_check
        %p215 = pneg %p123
      $region26: #{tonemapper_rgb_combine.1} parent=11 // pred_check_branch
        %217 = sbr.rel (%p215) target = $region28
      $region27: #{tonemapper_rgb_combine.1} parent=11 // pred_region
        _
      $region28: #{tonemapper_rgb_combine.1} parent=11 // pred_fallthru
        _
      // Predicated region
      $region29: #{tonemapper_rgb_combine.1} parent=11 // pred_check
        %p218 = pneg %p144
      $region30: #{tonemapper_rgb_combine.1} parent=11 // pred_check_branch
        %220 = sbr.rel (%p218) target = $region32
      $region31: #{tonemapper_rgb_combine.1} parent=11 // pred_region
        _
      $region32: #{tonemapper_rgb_combine.1} parent=11 // pred_fallthru
        _
      // Predicated region
      $region33: #{tonemapper_rgb_combine.1} parent=11 // pred_check
        %p221 = pneg %p165
      $region34: #{tonemapper_rgb_combine.1} parent=11 // pred_check_branch
        %223 = sbr.rel (%p221) target = $region36
      $region35: #{tonemapper_rgb_combine.1} parent=11 // pred_region
        _
      $region36: #{tonemapper_rgb_combine.1} parent=11 // pred_fallthru
        _
    $region12: #{tonemapper_rgb_combine.1} parent=5 // pred_fallthru
      _
    %p224 = scmp.lt.s32.totalorder %s13, 2
    // Predicated region
    $region37: #{tonemapper_rgb_combine.1} parent=5 // pred_check
      %p225 = pneg %p224
    $region38: #{tonemapper_rgb_combine.1} parent=5 // pred_check_branch
      %227 = sbr.rel (%p225) target = $region40
    $region39: #{tonemapper_rgb_combine.1} parent=5 // pred_region
      // Predicated region
      $region41: #{tonemapper_rgb_combine.1} parent=39 // pred_check
        %p228 = pneg %p33
      $region42: #{tonemapper_rgb_combine.1} parent=39 // pred_check_branch
        %230 = sbr.rel (%p228) target = $region44
      $region43: #{tonemapper_rgb_combine.1} parent=39 // pred_region
        %p231 = scmp.lt.s32.totalorder %s13, 1
        %s232 = scalar_select %p231, %s13, 1
        %s233 = smul.addr %s232, 3
        %s234 = smul.addr %s233, 4
        %s235 = scalar_lea.vmem %s0, %s234
      $region44: #{tonemapper_rgb_combine.1} parent=39 // pred_fallthru
        _
    $region40: #{tonemapper_rgb_combine.1} parent=5 // pred_fallthru
      _
    %p236 = scmp.le.s32.totalorder 1, %s13
    %p237 = scmp.lt.s32.totalorder %s13, 3
    %p238 = pnand %p236, %p237
    %p239 = pneg %p238
    // Predicated region
    $region45: #{tonemapper_rgb_combine.1} parent=5 // pred_check
      _
    $region46: #{tonemapper_rgb_combine.1} parent=5 // pred_check_branch
      %241 = sbr.rel (%p238) target = $region48
    $region47: #{tonemapper_rgb_combine.1} parent=5 // pred_region
      %s242 = ssub.s32 %s13, 1
      %p243 = scmp.lt.s32.totalorder %s18, 1
      %s244 = scalar_select %p243, %s18, 1
      %s245 = smul.addr %s244, 3
      %s246 = smul.addr %s245, 4
      %s247 = scalar_lea.vmem %s0, %s246
      %p248 = pneg %p39
      %p249 = pneg %p36
      %p250 = pneg %p60
      %p251 = pneg %p57
      %p252 = pneg %p81
      %p253 = pneg %p78
      %p254 = pneg %p102
      %p255 = pneg %p99
      %p256 = pneg %p123
      %p257 = pneg %p120
      %p258 = pneg %p144
      %p259 = pneg %p141
      %p260 = pneg %p165
      %p261 = pneg %p162
      %p262 = pneg %p191
      %p263 = pneg %p188
      %p264 = scmp.lt.s32.totalorder %s18, 1
      %s265 = scalar_select %p264, %s18, 1
      %s266 = smul.addr %s265, 3
      %s267 = smul.addr %s266, 4
      %s268 = scalar_lea.vmem %s7, %s267
      %p269 = scmp.lt.s32.totalorder %s18, 1
      %s270 = scalar_select %p269, %s18, 1
      %s271 = smul.addr %s270, 3
      %s272 = smul.addr %s271, 4
      %s273 = scalar_lea.vmem %s0, %s272
      %p274 = scmp.lt.s32.totalorder %s18, 1
      %s275 = scalar_select %p274, %s18, 1
      %s276 = smul.addr %s275, 3
      %s277 = smul.addr %s276, 4
      %s278 = scalar_lea.vmem %s7, %s277
      %v279 = vlaneseq
      %v280 = vand.u32 %v279, 127
      %v281 = vadd.s32 %v280, 128
      %v282 = vadd.s32 %v280, 256
      %vm283 = vcmp.lt.s32.totalorder %v280, 0
      %v284 = vsub.s32 0, %v280
      %v285 = vsel %vm283, %v284, %v280
      %v286 = vmul.u32.u64.compose %v285, 3817748708
      %v287 = vextract.low.u32 %v286
      %v288 = vextract.high.u32 %v286
      %v289 = vshrl.u32 %v288, 4
      %v290 = vmul.u32 %v289, 18
      %v291 = vsub.s32 %v285, %v290
      %v292 = vsub.s32 0, %v291
      %v293 = vsel %vm283, %v292, %v291
      %vm294 = vcmp.lt.s32.totalorder %v281, 0
      %v295 = vsub.s32 0, %v281
      %v296 = vsel %vm294, %v295, %v281
      %v297 = vmul.u32.u64.compose %v296, 3817748708
      %v298 = vextract.low.u32 %v297
      %v299 = vextract.high.u32 %v297
      %v300 = vshrl.u32 %v299, 4
      %v301 = vmul.u32 %v300, 18
      %v302 = vsub.s32 %v296, %v301
      %v303 = vsub.s32 0, %v302
      %v304 = vsel %vm294, %v303, %v302
      %vm305 = vcmp.lt.s32.totalorder %v282, 0
      %v306 = vsub.s32 0, %v282
      %v307 = vsel %vm305, %v306, %v282
      %v308 = vmul.u32.u64.compose %v307, 3817748708
      %v309 = vextract.low.u32 %v308
      %v310 = vextract.high.u32 %v308
      %v311 = vshrl.u32 %v310, 4
      %v312 = vmul.u32 %v311, 18
      %v313 = vsub.s32 %v307, %v312
      %v314 = vsub.s32 0, %v313
      %v315 = vsel %vm305, %v314, %v313
      %vm316 = vcmp.ne.s32.totalorder %v293, 0
      %vm317 = vcmp.ne.s32.totalorder %v304, 0
      %vm318 = vcmp.ne.s32.totalorder %v315, 0
      %vm319 = vcmp.lt.s32.totalorder %v293, 0
      %vm320 = vcmp.lt.s32.totalorder %v304, 0
      %vm321 = vcmp.lt.s32.totalorder %v315, 0
      %vm322 = vmand %vm319, %vm316
      %vm323 = vmand %vm320, %vm317
      %vm324 = vmand %vm321, %vm318
      %v325 = vadd.s32 %v293, 18
      %v326 = vadd.s32 %v304, 18
      %v327 = vadd.s32 %v315, 18
      %v328 = vsel %vm322, %v325, %v293
      %v329 = vsel %vm323, %v326, %v304
      %v330 = vsel %vm324, %v327, %v315
      %vm331 = vcmp.lt.s32.totalorder %v328, 16
      %vm332 = vcmp.lt.s32.totalorder %v329, 16
      %vm333 = vcmp.lt.s32.totalorder %v330, 16
      %v334 = vsel %vm331, 1, 0
      %v335 = vsel %vm332, 1, 0
      %v336 = vsel %vm333, 1, 0
      %v337 = vcvt.s32.f32 %v334
      %v338 = vcvt.s32.f32 %v335
      %v339 = vcvt.s32.f32 %v336
      %vm340 = vcmask 154624
      %341 = vst.msk [vmem:[#allocation2] sm:$0xff] %vm340, 0.0
      %342 = vst.msk [vmem:[#allocation2 + $0x18] sm:$0xff] %vm340, 0.0
      %vm343 = vcmask 703896
      %344 = vst.msk [vmem:[#allocation2 + $0x10] sm:$0xff] %vm343, 0.0
      %345 = vst.msk [vmem:[#allocation2 + $0x28] sm:$0xff] %vm343, 0.0
      %v346 = vld [vmem:[%s273] sm:$0x77]
      %v347 = vld [vmem:[%s273 + $0x8] sm:$0x7]
      %v348 = vld [vmem:[%s1] sm:$0xff]
      %v349 = vld [vmem:[%s1 + $0x8] sm:$0xff]
      %v350 = vld [vmem:[%s2] sm:$0xff]
      %v351 = vld [vmem:[%s2 + $0x8] sm:$0xff]
      %v354 = vcombine.high %v346, %v346
      %v356 = vrot.slane %v346, 5
      %v357 = vrot.slane %v354, 5
      %v358 = vrot.slane %v347, 5
      %359 = vrot.lane.b32.xlu0 %v356, 127
      %v360 = vpop.permute.xlu0 %359
      %361 = vrot.lane.b32.xlu0 %v357, 127
      %v362 = vpop.permute.xlu0 %361
      %363 = vrot.lane.b32.xlu0 %v358, 127
      %v364 = vpop.permute.xlu0 %363
      %vm365 = vcmask 1039360
      %v366 = vsel %vm365, %v360, %v362
      %v367 = vsel %vm365, %v362, %v364
      %v371 = vrot.slane %v346, 2
      %v372 = vrot.slane %v354, 2
      %v373 = vrot.slane %v347, 2
      %374 = vrot.lane.b32.xlu0 %v371, 126
      %v375 = vpop.permute.xlu0 %374
      %376 = vrot.lane.b32.xlu0 %v372, 126
      %v377 = vpop.permute.xlu0 %376
      %378 = vrot.lane.b32.xlu0 %v373, 126
      %v379 = vpop.permute.xlu0 %378
      %vm380 = vcmask 1031168
      %v381 = vsel %vm380, %v375, %v377
      %v382 = vsel %vm380, %v377, %v379
      %v386 = vrot.slane %v346, 7
      %v387 = vrot.slane %v354, 7
      %v388 = vrot.slane %v347, 7
      %389 = vrot.lane.b32.xlu0 %v386, 110
      %v390 = vpop.permute.xlu0 %389
      %391 = vrot.lane.b32.xlu0 %v387, 110
      %v392 = vpop.permute.xlu0 %391
      %393 = vrot.lane.b32.xlu0 %v388, 110
      %v394 = vpop.permute.xlu0 %393
      %vm395 = vcmask 900096
      %v396 = vsel %vm395, %v390, %v392
      %v397 = vsel %vm395, %v392, %v394
      %v401 = vcombine.low %v346, %v346
      %v402 = vcombine.low %v347, %v347
      %403 = vrot.lane.b32.xlu0 %v401, 109
      %v404 = vpop.permute.xlu0 %403
      %405 = vrot.lane.b32.xlu0 %v346, 109
      %v406 = vpop.permute.xlu0 %405
      %407 = vrot.lane.b32.xlu0 %v402, 109
      %v408 = vpop.permute.xlu0 %407
      %vm409 = vcmask 891904
      %v410 = vsel %vm409, %v404, %v406
      %v411 = vsel %vm409, %v406, %v408
      %v415 = vrot.slane %v346, 1
      %v416 = vrot.slane %v354, 1
      %v417 = vrot.slane %v347, 1
      %418 = vrot.lane.b32.xlu0 %v415, 108
      %v419 = vpop.permute.xlu0 %418
      %420 = vrot.lane.b32.xlu0 %v416, 108
      %v421 = vpop.permute.xlu0 %420
      %422 = vrot.lane.b32.xlu0 %v417, 108
      %v423 = vpop.permute.xlu0 %422
      %vm424 = vcmask 883712
      %v425 = vsel %vm424, %v419, %v421
      %v426 = vsel %vm424, %v421, %v423
      %v430 = vrot.slane %v346, 6
      %v431 = vrot.slane %v354, 6
      %v432 = vrot.slane %v347, 6
      %433 = vrot.lane.b32.xlu0 %v430, 92
      %v434 = vpop.permute.xlu0 %433
      %435 = vrot.lane.b32.xlu0 %v431, 92
      %v436 = vpop.permute.xlu0 %435
      %437 = vrot.lane.b32.xlu0 %v432, 92
      %v438 = vpop.permute.xlu0 %437
      %vm439 = vcmask 752640
      %v440 = vsel %vm439, %v434, %v436
      %v441 = vsel %vm439, %v436, %v438
      %v445 = vrot.slane %v346, 3
      %v446 = vrot.slane %v354, 3
      %v447 = vrot.slane %v347, 3
      %448 = vrot.lane.b32.xlu0 %v445, 91
      %v449 = vpop.permute.xlu0 %448
      %450 = vrot.lane.b32.xlu0 %v446, 91
      %v451 = vpop.permute.xlu0 %450
      %452 = vrot.lane.b32.xlu0 %v447, 91
      %v453 = vpop.permute.xlu0 %452
      %vm454 = vcmask 744448
      %v455 = vsel %vm454, %v449, %v451
      %v456 = vsel %vm454, %v451, %v453
      %460 = vrot.lane.b32.xlu0 %v346, 90
      %v461 = vpop.permute.xlu0 %460
      %462 = vrot.lane.b32.xlu0 %v354, 90
      %v463 = vpop.permute.xlu0 %462
      %464 = vrot.lane.b32.xlu0 %v347, 90
      %v465 = vpop.permute.xlu0 %464
      %vm466 = vcmask 736256
      %v467 = vsel %vm466, %v461, %v463
      %v468 = vsel %vm466, %v463, %v465
      %vm469 = vcmask 1042432
      %v470 = vsel %vm469, %v346, %v366
      %v471 = vsel %vm469, %v354, %v367
      %v472 = vsel %vm469, %v347, %v364
      %vm473 = vcmask 1045504
      %v474 = vsel %vm473, %v470, %v381
      %v475 = vsel %vm473, %v471, %v382
      %v476 = vsel %vm473, %v472, %v379
      %vm477 = vcmask 1040384
      %v478 = vsel %vm477, %v381, %v396
      %v479 = vsel %vm477, %v382, %v397
      %v480 = vsel %vm477, %v379, %v394
      %vm481 = vcmask 1043456
      %v482 = vsel %vm481, %v478, %v410
      %v483 = vsel %vm481, %v479, %v411
      %v484 = vsel %vm481, %v480, %v408
      %vm485 = vcmask 1046528
      %v486 = vsel %vm485, %v482, %v425
      %v487 = vsel %vm485, %v483, %v426
      %v488 = vsel %vm485, %v484, %v423
      %vm489 = vcmask 1041408
      %v490 = vsel %vm489, %v425, %v440
      %v491 = vsel %vm489, %v426, %v441
      %v492 = vsel %vm489, %v423, %v438
      %vm493 = vcmask 1044480
      %v494 = vsel %vm493, %v490, %v455
      %v495 = vsel %vm493, %v491, %v456
      %v496 = vsel %vm493, %v492, %v453
      %498 = vset.pattern.permute.xlu0 0
      %499 = vperm.xlu0 %498, %v350
      %v500 = vpop.permute.xlu0 %499
      %503 = vset.pattern.permute.xlu0 0
      %504 = vperm.xlu0 %503, %v351
      %v505 = vpop.permute.xlu0 %504
      %vm507 = vcmask 220160
      %v509 = vsel %vm507, %v348, 0
      %v512 = vsel %vm507, %v349, 0
      %v514 = vsel %vm469, %v467, 0
      %v516 = vsel %vm469, %v468, 0
      %v518 = vsel %vm469, %v465, 0
      %520 = vmatprep.subr.mxu0 0.0
      %521 = vmatpush1.msra.mxu0 0.0
      %522 = vmatprep.subr.mxu0 0.0
      %523 = vmatpush1.msra.mxu0 0.0
      %524 = vmatprep.subr.mxu0 0.0
      %525 = vmatpush1.msra.mxu0 0.0
      %526 = vmatprep.subr.mxu0 0.0
      %527 = vmatpush1.msra.mxu0 0.0
      %528 = vmatprep.subr.mxu0 0.0
      %529 = vmatpush1.msra.mxu0 0.0
      %530 = vmatprep.subr.mxu0 0.0
      %531 = vmatpush1.msra.mxu0 0.0
      %532 = vmatprep.subr.mxu0 0.0
      %533 = vmatpush1.msra.mxu0 0.0
      %534 = vmatprep.subr.mxu0 0.0
      %535 = vmatpush1.msra.mxu0 0.0
      %536 = vmatprep.subr.mxu0 0.0
      %537 = vmatpush1.msra.mxu0 0.0
      %538 = vmatprep.subr.mxu0 0.0
      %539 = vmatpush1.msra.mxu0 0.0
      %540 = vmatprep.subr.mxu0 0.0
      %541 = vmatpush1.msra.mxu0 0.0
      %542 = vmatprep.subr.mxu0 0.0
      %543 = vmatpush1.msra.mxu0 0.0
      %544 = vmatprep.subr.mxu0 %v516
      %545 = vmatpush1.msra.mxu0 %v514
      %546 = vmatprep.subr.mxu0 %v495
      %547 = vmatpush1.msra.mxu0 %v494
      %548 = vmatprep.subr.mxu0 %v487
      %549 = vmatpush1.msra.mxu0 %v486
      %550 = vmatprep.subr.mxu0 %v475
      %551 = vmatpush1.msra.mxu0 %v474
      %552 = vmatprep.subr.mxu0 0.0
      %553 = vmatpush2.msra.mxu0 0.0
      %554 = vmatprep.subr.mxu0 0.0
      %555 = vmatpush2.msra.mxu0 0.0
      %556 = vmatprep.subr.mxu0 0.0
      %557 = vmatpush2.msra.mxu0 0.0
      %558 = vmatprep.subr.mxu0 0.0
      %559 = vmatpush2.msra.mxu0 0.0
      %560 = vmatprep.subr.mxu0 0.0
      %561 = vmatpush2.msra.mxu0 0.0
      %562 = vmatprep.subr.mxu0 0.0
      %563 = vmatpush2.msra.mxu0 0.0
      %564 = vmatprep.subr.mxu0 0.0
      %565 = vmatpush2.msra.mxu0 0.0
      %566 = vmatprep.subr.mxu0 0.0
      %567 = vmatpush2.msra.mxu0 0.0
      %568 = vmatprep.subr.mxu0 0.0
      %569 = vmatpush2.msra.mxu0 0.0
      %570 = vmatprep.subr.mxu0 0.0
      %571 = vmatpush2.msra.mxu0 0.0
      %572 = vmatprep.subr.mxu0 0.0
      %573 = vmatpush2.msra.mxu0 0.0
      %574 = vmatprep.subr.mxu0 0.0
      %575 = vmatpush2.msra.mxu0 0.0
      %576 = vmatprep.subr.mxu0 0.0
      %577 = vmatpush2.msra.mxu0 0.0
      %578 = vmatprep.subr.mxu0 0.0
      %579 = vmatpush2.msra.mxu0 0.0
      %580 = vmatprep.subr.mxu0 0.0
      %581 = vmatpush2.msra.mxu0 0.0
      %582 = vmatprep.subr.mxu0 0.0
      %583 = vmatpush2.msra.mxu0 0.0
      %584 = vmatprep.mubr.f32.mxu0 0.0
      %585 = vmatmul.mubr.f32.gmra.mxu0 %v509
      %v586 = vpop.f32.mrf.mxu0
      %v587 = vadd.f32 %v500, %v586
      %v588 = vpop.f32.mrf.mxu0
      %v589 = vadd.f32 %v500, %v588
      %590 = vmatprep.mubr.f32.mxu0 0.0
      %591 = vmatmul.mubr.f32.gmra.mxu0 %v512
      %v592 = vpop.f32.mrf.mxu0
      %v593 = vadd.f32 %v505, %v592
      %v594 = vpop.f32.mrf.mxu0
      %v595 = vadd.f32 %v505, %v594
      %596 = vdwg.mxu0
      %597 = vmatprep.subr.mxu0 0.0
      %598 = vmatpush1.msra.mxu0 0.0
      %599 = vmatprep.subr.mxu0 0.0
      %600 = vmatpush1.msra.mxu0 0.0
      %601 = vmatprep.subr.mxu0 0.0
      %602 = vmatpush1.msra.mxu0 0.0
      %603 = vmatprep.subr.mxu0 0.0
      %604 = vmatpush1.msra.mxu0 0.0
      %605 = vmatprep.subr.mxu0 0.0
      %606 = vmatpush1.msra.mxu0 0.0
      %607 = vmatprep.subr.mxu0 0.0
      %608 = vmatpush1.msra.mxu0 0.0
      %609 = vmatprep.subr.mxu0 0.0
      %610 = vmatpush1.msra.mxu0 0.0
      %611 = vmatprep.subr.mxu0 0.0
      %612 = vmatpush1.msra.mxu0 0.0
      %613 = vmatprep.subr.mxu0 0.0
      %614 = vmatpush1.msra.mxu0 0.0
      %615 = vmatprep.subr.mxu0 0.0
      %616 = vmatpush1.msra.mxu0 0.0
      %617 = vmatprep.subr.mxu0 0.0
      %618 = vmatpush1.msra.mxu0 0.0
      %619 = vmatprep.subr.mxu0 0.0
      %620 = vmatpush1.msra.mxu0 0.0
      %621 = vmatprep.subr.mxu0 0.0
      %622 = vmatpush1.msra.mxu0 %v518
      %623 = vmatprep.subr.mxu0 0.0
      %624 = vmatpush1.msra.mxu0 %v496
      %625 = vmatprep.subr.mxu0 0.0
      %626 = vmatpush1.msra.mxu0 %v488
      %627 = vmatprep.subr.mxu0 0.0
      %628 = vmatpush1.msra.mxu0 %v476
      %629 = vmatprep.subr.mxu0 0.0
      %630 = vmatpush2.msra.mxu0 0.0
      %631 = vmatprep.subr.mxu0 0.0
      %632 = vmatpush2.msra.mxu0 0.0
      %633 = vmatprep.subr.mxu0 0.0
      %634 = vmatpush2.msra.mxu0 0.0
      %635 = vmatprep.subr.mxu0 0.0
      %636 = vmatpush2.msra.mxu0 0.0
      %637 = vmatprep.subr.mxu0 0.0
      %638 = vmatpush2.msra.mxu0 0.0
      %639 = vmatprep.subr.mxu0 0.0
      %640 = vmatpush2.msra.mxu0 0.0
      %641 = vmatprep.subr.mxu0 0.0
      %642 = vmatpush2.msra.mxu0 0.0
      %643 = vmatprep.subr.mxu0 0.0
      %644 = vmatpush2.msra.mxu0 0.0
      %645 = vmatprep.subr.mxu0 0.0
      %646 = vmatpush2.msra.mxu0 0.0
      %647 = vmatprep.subr.mxu0 0.0
      %648 = vmatpush2.msra.mxu0 0.0
      %649 = vmatprep.subr.mxu0 0.0
      %650 = vmatpush2.msra.mxu0 0.0
      %651 = vmatprep.subr.mxu0 0.0
      %652 = vmatpush2.msra.mxu0 0.0
      %653 = vmatprep.subr.mxu0 0.0
      %654 = vmatpush2.msra.mxu0 0.0
      %655 = vmatprep.subr.mxu0 0.0
      %656 = vmatpush2.msra.mxu0 0.0
      %657 = vmatprep.subr.mxu0 0.0
      %658 = vmatpush2.msra.mxu0 0.0
      %659 = vmatprep.subr.mxu0 0.0
      %660 = vmatpush2.msra.mxu0 0.0
      %661 = vmatprep.mubr.f32.mxu0 0.0
      %662 = vmatmul.mubr.f32.gmra.mxu0 %v509
      %v663 = vpop.f32.mrf.mxu0
      %v664 = vadd.f32 %v500, %v663
      %v665 = vpop.f32.mrf.mxu0
      %666 = vmatprep.mubr.f32.mxu0 0.0
      %667 = vmatmul.mubr.f32.gmra.mxu0 %v512
      %v668 = vpop.f32.mrf.mxu0
      %v669 = vadd.f32 %v505, %v668
      %v670 = vpop.f32.mrf.mxu0
      %671 = vdwg.mxu0
      %v672 = vmax.f32 %v587, 0.0
      %v673 = vmax.f32 %v589, 0.0
      %v674 = vmax.f32 %v664, 0.0
      %v675 = vmax.f32 %v593, 0.0
      %v676 = vmax.f32 %v595, 0.0
      %v677 = vmax.f32 %v669, 0.0
      %v678 = vmul.f32 %v672, %v337
      %v679 = vmul.f32 %v673, %v338
      %v680 = vmul.f32 %v674, %v339
      %v681 = vmul.f32 %v675, %v337
      %v682 = vmul.f32 %v676, %v338
      %v683 = vmul.f32 %v677, %v339
      %690 = vrot.lane.b32.xlu0 %v678, 19
      %v691 = vpop.permute.xlu0 %690
      %692 = vrot.lane.b32.xlu0 %v679, 19
      %v693 = vpop.permute.xlu0 %692
      %694 = vrot.lane.b32.xlu0 %v680, 19
      %v695 = vpop.permute.xlu0 %694
      %696 = vrot.lane.b32.xlu0 %v681, 19
      %v697 = vpop.permute.xlu0 %696
      %698 = vrot.lane.b32.xlu0 %v682, 19
      %v699 = vpop.permute.xlu0 %698
      %700 = vrot.lane.b32.xlu0 %v683, 19
      %v701 = vpop.permute.xlu0 %700
      %v702 = vsel %vm340, %v691, %v693
      %v703 = vsel %vm340, %v693, %v695
      %v704 = vsel %vm340, %v697, %v699
      %v705 = vsel %vm340, %v699, %v701
      %vm712 = vcmask 1047704
      %713 = vst.msk [vmem:[#allocation2] sm:$0xff] %vm712, %v691
      %714 = vst [vmem:[#allocation2 + $0x8] sm:$0xff] %v702
      %vm715 = vcmask 416768
      %716 = vst.msk [vmem:[#allocation2 + $0x10] sm:$0xff] %vm715, %v703
      %717 = vst.msk [vmem:[#allocation2 + $0x18] sm:$0xff] %vm712, %v697
      %718 = vst [vmem:[#allocation2 + $0x20] sm:$0xff] %v704
      %719 = vst.msk [vmem:[#allocation2 + $0x28] sm:$0xff] %vm715, %v705
      %v720 = vld [vmem:[#allocation2] sm:$0xff]
      %v721 = vld [vmem:[#allocation2 + $0x8] sm:$0xff]
      %v722 = vld [vmem:[#allocation2 + $0x10] sm:$0xff]
      %v723 = vld [vmem:[#allocation2 + $0x18] sm:$0xff]
      %v724 = vld [vmem:[#allocation2 + $0x20] sm:$0xff]
      %v725 = vld [vmem:[#allocation2 + $0x28] sm:$0xff]
      %v726 = vld [vmem:[%s3] sm:$0xff]
      %v727 = vld [vmem:[%s3 + $0x8] sm:$0xff]
      %v728 = vld [vmem:[%s3 + $0x10] sm:$0xff]
      %v729 = vld [vmem:[%s3 + $0x18] sm:$0xff]
      %v730 = vld [vmem:[%s4] sm:$0xff]
      %v731 = vld [vmem:[%s4 + $0x8] sm:$0xff]
      %738 = vrot.lane.b32.xlu0 %v720, 127
      %v739 = vpop.permute.xlu0 %738
      %740 = vrot.lane.b32.xlu0 %v721, 127
      %v741 = vpop.permute.xlu0 %740
      %742 = vrot.lane.b32.xlu0 %v722, 127
      %v743 = vpop.permute.xlu0 %742
      %744 = vrot.lane.b32.xlu0 %v723, 127
      %v745 = vpop.permute.xlu0 %744
      %746 = vrot.lane.b32.xlu0 %v724, 127
      %v747 = vpop.permute.xlu0 %746
      %748 = vrot.lane.b32.xlu0 %v725, 127
      %v749 = vpop.permute.xlu0 %748
      %v750 = vsel %vm365, %v739, %v741
      %v751 = vsel %vm365, %v741, %v743
      %v752 = vsel %vm365, %v745, %v747
      %v753 = vsel %vm365, %v747, %v749
      %760 = vrot.lane.b32.xlu0 %v720, 126
      %v761 = vpop.permute.xlu0 %760
      %762 = vrot.lane.b32.xlu0 %v721, 126
      %v763 = vpop.permute.xlu0 %762
      %764 = vrot.lane.b32.xlu0 %v722, 126
      %v765 = vpop.permute.xlu0 %764
      %766 = vrot.lane.b32.xlu0 %v723, 126
      %v767 = vpop.permute.xlu0 %766
      %768 = vrot.lane.b32.xlu0 %v724, 126
      %v769 = vpop.permute.xlu0 %768
      %770 = vrot.lane.b32.xlu0 %v725, 126
      %v771 = vpop.permute.xlu0 %770
      %v772 = vsel %vm380, %v761, %v763
      %v773 = vsel %vm380, %v763, %v765
      %v774 = vsel %vm380, %v767, %v769
      %v775 = vsel %vm380, %v769, %v771
      %782 = vrot.lane.b32.xlu0 %v720, 110
      %v783 = vpop.permute.xlu0 %782
      %784 = vrot.lane.b32.xlu0 %v721, 110
      %v785 = vpop.permute.xlu0 %784
      %786 = vrot.lane.b32.xlu0 %v722, 110
      %v787 = vpop.permute.xlu0 %786
      %788 = vrot.lane.b32.xlu0 %v723, 110
      %v789 = vpop.permute.xlu0 %788
      %790 = vrot.lane.b32.xlu0 %v724, 110
      %v791 = vpop.permute.xlu0 %790
      %792 = vrot.lane.b32.xlu0 %v725, 110
      %v793 = vpop.permute.xlu0 %792
      %v794 = vsel %vm395, %v783, %v785
      %v795 = vsel %vm395, %v785, %v787
      %v796 = vsel %vm395, %v789, %v791
      %v797 = vsel %vm395, %v791, %v793
      %804 = vrot.lane.b32.xlu0 %v720, 109
      %v805 = vpop.permute.xlu0 %804
      %806 = vrot.lane.b32.xlu0 %v721, 109
      %v807 = vpop.permute.xlu0 %806
      %808 = vrot.lane.b32.xlu0 %v722, 109
      %v809 = vpop.permute.xlu0 %808
      %810 = vrot.lane.b32.xlu0 %v723, 109
      %v811 = vpop.permute.xlu0 %810
      %812 = vrot.lane.b32.xlu0 %v724, 109
      %v813 = vpop.permute.xlu0 %812
      %814 = vrot.lane.b32.xlu0 %v725, 109
      %v815 = vpop.permute.xlu0 %814
      %v816 = vsel %vm409, %v805, %v807
      %v817 = vsel %vm409, %v807, %v809
      %v818 = vsel %vm409, %v811, %v813
      %v819 = vsel %vm409, %v813, %v815
      %826 = vrot.lane.b32.xlu0 %v720, 108
      %v827 = vpop.permute.xlu0 %826
      %828 = vrot.lane.b32.xlu0 %v721, 108
      %v829 = vpop.permute.xlu0 %828
      %830 = vrot.lane.b32.xlu0 %v722, 108
      %v831 = vpop.permute.xlu0 %830
      %832 = vrot.lane.b32.xlu0 %v723, 108
      %v833 = vpop.permute.xlu0 %832
      %834 = vrot.lane.b32.xlu0 %v724, 108
      %v835 = vpop.permute.xlu0 %834
      %836 = vrot.lane.b32.xlu0 %v725, 108
      %v837 = vpop.permute.xlu0 %836
      %v838 = vsel %vm424, %v827, %v829
      %v839 = vsel %vm424, %v829, %v831
      %v840 = vsel %vm424, %v833, %v835
      %v841 = vsel %vm424, %v835, %v837
      %848 = vrot.lane.b32.xlu0 %v720, 92
      %v849 = vpop.permute.xlu0 %848
      %850 = vrot.lane.b32.xlu0 %v721, 92
      %v851 = vpop.permute.xlu0 %850
      %852 = vrot.lane.b32.xlu0 %v722, 92
      %v853 = vpop.permute.xlu0 %852
      %854 = vrot.lane.b32.xlu0 %v723, 92
      %v855 = vpop.permute.xlu0 %854
      %856 = vrot.lane.b32.xlu0 %v724, 92
      %v857 = vpop.permute.xlu0 %856
      %858 = vrot.lane.b32.xlu0 %v725, 92
      %v859 = vpop.permute.xlu0 %858
      %v860 = vsel %vm439, %v849, %v851
      %v861 = vsel %vm439, %v851, %v853
      %v862 = vsel %vm439, %v855, %v857
      %v863 = vsel %vm439, %v857, %v859
      %870 = vrot.lane.b32.xlu0 %v720, 91
      %v871 = vpop.permute.xlu0 %870
      %872 = vrot.lane.b32.xlu0 %v721, 91
      %v873 = vpop.permute.xlu0 %872
      %874 = vrot.lane.b32.xlu0 %v722, 91
      %v875 = vpop.permute.xlu0 %874
      %876 = vrot.lane.b32.xlu0 %v723, 91
      %v877 = vpop.permute.xlu0 %876
      %878 = vrot.lane.b32.xlu0 %v724, 91
      %v879 = vpop.permute.xlu0 %878
      %880 = vrot.lane.b32.xlu0 %v725, 91
      %v881 = vpop.permute.xlu0 %880
      %v882 = vsel %vm454, %v871, %v873
      %v883 = vsel %vm454, %v873, %v875
      %v884 = vsel %vm454, %v877, %v879
      %v885 = vsel %vm454, %v879, %v881
      %892 = vrot.lane.b32.xlu0 %v720, 90
      %v893 = vpop.permute.xlu0 %892
      %894 = vrot.lane.b32.xlu0 %v721, 90
      %v895 = vpop.permute.xlu0 %894
      %896 = vrot.lane.b32.xlu0 %v722, 90
      %v897 = vpop.permute.xlu0 %896
      %898 = vrot.lane.b32.xlu0 %v723, 90
      %v899 = vpop.permute.xlu0 %898
      %900 = vrot.lane.b32.xlu0 %v724, 90
      %v901 = vpop.permute.xlu0 %900
      %902 = vrot.lane.b32.xlu0 %v725, 90
      %v903 = vpop.permute.xlu0 %902
      %v904 = vsel %vm466, %v893, %v895
      %v905 = vsel %vm466, %v895, %v897
      %v906 = vsel %vm466, %v899, %v901
      %v907 = vsel %vm466, %v901, %v903
      %915 = vset.pattern.permute.xlu0 0
      %916 = vperm.xlu0 %915, %v730
      %v917 = vpop.permute.xlu0 %916
      %920 = vset.pattern.permute.xlu0 0
      %921 = vperm.xlu0 %920, %v731
      %v922 = vpop.permute.xlu0 %921
      %vm924 = vcmask 130048
      %v926 = vsel %vm924, %v727, 0
      %v929 = vsel %vm924, %v729, 0
      %931 = vmatprep.subr.mxu0 %v885
      %932 = vmatpush1.msra.mxu0 %v884
      %933 = vmatprep.subr.mxu0 %v883
      %934 = vmatpush1.msra.mxu0 %v882
      %935 = vmatprep.subr.mxu0 %v863
      %936 = vmatpush1.msra.mxu0 %v862
      %937 = vmatprep.subr.mxu0 %v861
      %938 = vmatpush1.msra.mxu0 %v860
      %939 = vmatprep.subr.mxu0 %v841
      %940 = vmatpush1.msra.mxu0 %v840
      %941 = vmatprep.subr.mxu0 %v839
      %942 = vmatpush1.msra.mxu0 %v838
      %943 = vmatprep.subr.mxu0 %v819
      %944 = vmatpush1.msra.mxu0 %v818
      %945 = vmatprep.subr.mxu0 %v817
      %946 = vmatpush1.msra.mxu0 %v816
      %947 = vmatprep.subr.mxu0 %v797
      %948 = vmatpush1.msra.mxu0 %v796
      %949 = vmatprep.subr.mxu0 %v795
      %950 = vmatpush1.msra.mxu0 %v794
      %951 = vmatprep.subr.mxu0 %v775
      %952 = vmatpush1.msra.mxu0 %v774
      %953 = vmatprep.subr.mxu0 %v773
      %954 = vmatpush1.msra.mxu0 %v772
      %955 = vmatprep.subr.mxu0 %v753
      %956 = vmatpush1.msra.mxu0 %v752
      %957 = vmatprep.subr.mxu0 %v751
      %958 = vmatpush1.msra.mxu0 %v750
      %959 = vmatprep.subr.mxu0 %v724
      %960 = vmatpush1.msra.mxu0 %v723
      %961 = vmatprep.subr.mxu0 %v721
      %962 = vmatpush1.msra.mxu0 %v720
      %963 = vmatprep.subr.mxu0 0.0
      %964 = vmatpush2.msra.mxu0 0.0
      %965 = vmatprep.subr.mxu0 0.0
      %966 = vmatpush2.msra.mxu0 0.0
      %967 = vmatprep.subr.mxu0 0.0
      %968 = vmatpush2.msra.mxu0 0.0
      %969 = vmatprep.subr.mxu0 0.0
      %970 = vmatpush2.msra.mxu0 0.0
      %971 = vmatprep.subr.mxu0 0.0
      %972 = vmatpush2.msra.mxu0 0.0
      %973 = vmatprep.subr.mxu0 0.0
      %974 = vmatpush2.msra.mxu0 0.0
      %975 = vmatprep.subr.mxu0 0.0
      %976 = vmatpush2.msra.mxu0 0.0
      %977 = vmatprep.subr.mxu0 0.0
      %978 = vmatpush2.msra.mxu0 0.0
      %979 = vmatprep.subr.mxu0 0.0
      %980 = vmatpush2.msra.mxu0 0.0
      %981 = vmatprep.subr.mxu0 0.0
      %982 = vmatpush2.msra.mxu0 0.0
      %983 = vmatprep.subr.mxu0 0.0
      %984 = vmatpush2.msra.mxu0 0.0
      %985 = vmatprep.subr.mxu0 0.0
      %986 = vmatpush2.msra.mxu0 0.0
      %987 = vmatprep.subr.mxu0 0.0
      %988 = vmatpush2.msra.mxu0 0.0
      %989 = vmatprep.subr.mxu0 0.0
      %990 = vmatpush2.msra.mxu0 0.0
      %991 = vmatprep.subr.mxu0 %v907
      %992 = vmatpush2.msra.mxu0 %v906
      %993 = vmatprep.subr.mxu0 %v905
      %994 = vmatpush2.msra.mxu0 %v904
      %995 = vmatprep.mubr.f32.mxu0 %v926
      %996 = vmatmul.mubr.f32.gmra.mxu0 %v726
      %v997 = vpop.f32.mrf.mxu0
      %v998 = vadd.f32 %v917, %v997
      %v999 = vpop.f32.mrf.mxu0
      %v1000 = vadd.f32 %v917, %v999
      %1001 = vmatprep.mubr.f32.mxu0 %v929
      %1002 = vmatmul.mubr.f32.gmra.mxu0 %v728
      %v1003 = vpop.f32.mrf.mxu0
      %v1004 = vadd.f32 %v922, %v1003
      %v1005 = vpop.f32.mrf.mxu0
      %v1006 = vadd.f32 %v922, %v1005
      %1007 = vdwg.mxu0
      %1008 = vmatprep.subr.mxu0 0.0
      %1009 = vmatpush1.msra.mxu0 %v881
      %1010 = vmatprep.subr.mxu0 0.0
      %1011 = vmatpush1.msra.mxu0 %v875
      %1012 = vmatprep.subr.mxu0 0.0
      %1013 = vmatpush1.msra.mxu0 %v859
      %1014 = vmatprep.subr.mxu0 0.0
      %1015 = vmatpush1.msra.mxu0 %v853
      %1016 = vmatprep.subr.mxu0 0.0
      %1017 = vmatpush1.msra.mxu0 %v837
      %1018 = vmatprep.subr.mxu0 0.0
      %1019 = vmatpush1.msra.mxu0 %v831
      %1020 = vmatprep.subr.mxu0 0.0
      %1021 = vmatpush1.msra.mxu0 %v815
      %1022 = vmatprep.subr.mxu0 0.0
      %1023 = vmatpush1.msra.mxu0 %v809
      %1024 = vmatprep.subr.mxu0 0.0
      %1025 = vmatpush1.msra.mxu0 %v793
      %1026 = vmatprep.subr.mxu0 0.0
      %1027 = vmatpush1.msra.mxu0 %v787
      %1028 = vmatprep.subr.mxu0 0.0
      %1029 = vmatpush1.msra.mxu0 %v771
      %1030 = vmatprep.subr.mxu0 0.0
      %1031 = vmatpush1.msra.mxu0 %v765
      %1032 = vmatprep.subr.mxu0 0.0
      %1033 = vmatpush1.msra.mxu0 %v749
      %1034 = vmatprep.subr.mxu0 0.0
      %1035 = vmatpush1.msra.mxu0 %v743
      %1036 = vmatprep.subr.mxu0 0.0
      %1037 = vmatpush1.msra.mxu0 %v725
      %1038 = vmatprep.subr.mxu0 0.0
      %1039 = vmatpush1.msra.mxu0 %v722
      %1040 = vmatprep.subr.mxu0 0.0
      %1041 = vmatpush2.msra.mxu0 0.0
      %1042 = vmatprep.subr.mxu0 0.0
      %1043 = vmatpush2.msra.mxu0 0.0
      %1044 = vmatprep.subr.mxu0 0.0
      %1045 = vmatpush2.msra.mxu0 0.0
      %1046 = vmatprep.subr.mxu0 0.0
      %1047 = vmatpush2.msra.mxu0 0.0
      %1048 = vmatprep.subr.mxu0 0.0
      %1049 = vmatpush2.msra.mxu0 0.0
      %1050 = vmatprep.subr.mxu0 0.0
      %1051 = vmatpush2.msra.mxu0 0.0
      %1052 = vmatprep.subr.mxu0 0.0
      %1053 = vmatpush2.msra.mxu0 0.0
      %1054 = vmatprep.subr.mxu0 0.0
      %1055 = vmatpush2.msra.mxu0 0.0
      %1056 = vmatprep.subr.mxu0 0.0
      %1057 = vmatpush2.msra.mxu0 0.0
      %1058 = vmatprep.subr.mxu0 0.0
      %1059 = vmatpush2.msra.mxu0 0.0
      %1060 = vmatprep.subr.mxu0 0.0
      %1061 = vmatpush2.msra.mxu0 0.0
      %1062 = vmatprep.subr.mxu0 0.0
      %1063 = vmatpush2.msra.mxu0 0.0
      %1064 = vmatprep.subr.mxu0 0.0
      %1065 = vmatpush2.msra.mxu0 0.0
      %1066 = vmatprep.subr.mxu0 0.0
      %1067 = vmatpush2.msra.mxu0 0.0
      %1068 = vmatprep.subr.mxu0 0.0
      %1069 = vmatpush2.msra.mxu0 %v903
      %1070 = vmatprep.subr.mxu0 0.0
      %1071 = vmatpush2.msra.mxu0 %v897
      %1072 = vmatprep.mubr.f32.mxu0 %v926
      %1073 = vmatmul.mubr.f32.gmra.mxu0 %v726
      %v1074 = vpop.f32.mrf.mxu0
      %v1075 = vadd.f32 %v917, %v1074
      %v1076 = vpop.f32.mrf.mxu0
      %1077 = vmatprep.mubr.f32.mxu0 %v929
      %1078 = vmatmul.mubr.f32.gmra.mxu0 %v728
      %v1079 = vpop.f32.mrf.mxu0
      %v1080 = vadd.f32 %v922, %v1079
      %v1081 = vpop.f32.mrf.mxu0
      %1082 = vdwg.mxu0
      %v1083 = vmax.f32 %v998, 0.0
      %v1084 = vmax.f32 %v1000, 0.0
      %v1085 = vmax.f32 %v1075, 0.0
      %v1086 = vmax.f32 %v1004, 0.0
      %v1087 = vmax.f32 %v1006, 0.0
      %v1088 = vmax.f32 %v1080, 0.0
      %v1089 = vmul.f32 %v1083, %v337
      %v1090 = vmul.f32 %v1084, %v338
      %v1091 = vmul.f32 %v1085, %v339
      %v1092 = vmul.f32 %v1086, %v337
      %v1093 = vmul.f32 %v1087, %v338
      %v1094 = vmul.f32 %v1088, %v339
      %1101 = vrot.lane.b32.xlu0 %v1089, 19
      %v1102 = vpop.permute.xlu0 %1101
      %1103 = vrot.lane.b32.xlu0 %v1090, 19
      %v1104 = vpop.permute.xlu0 %1103
      %1105 = vrot.lane.b32.xlu0 %v1091, 19
      %v1106 = vpop.permute.xlu0 %1105
      %1107 = vrot.lane.b32.xlu0 %v1092, 19
      %v1108 = vpop.permute.xlu0 %1107
      %1109 = vrot.lane.b32.xlu0 %v1093, 19
      %v1110 = vpop.permute.xlu0 %1109
      %1111 = vrot.lane.b32.xlu0 %v1094, 19
      %v1112 = vpop.permute.xlu0 %1111
      %v1113 = vsel %vm340, %v1102, %v1104
      %v1114 = vsel %vm340, %v1104, %v1106
      %v1115 = vsel %vm340, %v1108, %v1110
      %v1116 = vsel %vm340, %v1110, %v1112
      %1123 = vst.msk [vmem:[#allocation2] sm:$0xff] %vm712, %v1102
      %1124 = vst [vmem:[#allocation2 + $0x8] sm:$0xff] %v1113
      %1125 = vst.msk [vmem:[#allocation2 + $0x10] sm:$0xff] %vm715, %v1114
      %1126 = vst.msk [vmem:[#allocation2 + $0x18] sm:$0xff] %vm712, %v1108
      %1127 = vst [vmem:[#allocation2 + $0x20] sm:$0xff] %v1115
      %1128 = vst.msk [vmem:[#allocation2 + $0x28] sm:$0xff] %vm715, %v1116
      %v1129 = vld [vmem:[#allocation2] sm:$0xff]
      %v1130 = vld [vmem:[#allocation2 + $0x8] sm:$0xff]
      %v1131 = vld [vmem:[#allocation2 + $0x10] sm:$0xff]
      %v1132 = vld [vmem:[#allocation2 + $0x18] sm:$0xff]
      %v1133 = vld [vmem:[#allocation2 + $0x20] sm:$0xff]
      %v1134 = vld [vmem:[#allocation2 + $0x28] sm:$0xff]
      %v1135 = vld [vmem:[%s5] sm:$0x77]
      %v1136 = vld [vmem:[%s6] sm:$0x7]
      %1143 = vrot.lane.b32.xlu0 %v1129, 127
      %v1144 = vpop.permute.xlu0 %1143
      %1145 = vrot.lane.b32.xlu0 %v1130, 127
      %v1146 = vpop.permute.xlu0 %1145
      %1147 = vrot.lane.b32.xlu0 %v1131, 127
      %v1148 = vpop.permute.xlu0 %1147
      %1149 = vrot.lane.b32.xlu0 %v1132, 127
      %v1150 = vpop.permute.xlu0 %1149
      %1151 = vrot.lane.b32.xlu0 %v1133, 127
      %v1152 = vpop.permute.xlu0 %1151
      %1153 = vrot.lane.b32.xlu0 %v1134, 127
      %v1154 = vpop.permute.xlu0 %1153
      %v1155 = vsel %vm365, %v1144, %v1146
      %v1156 = vsel %vm365, %v1146, %v1148
      %v1157 = vsel %vm365, %v1150, %v1152
      %v1158 = vsel %vm365, %v1152, %v1154
      %1165 = vrot.lane.b32.xlu0 %v1129, 126
      %v1166 = vpop.permute.xlu0 %1165
      %1167 = vrot.lane.b32.xlu0 %v1130, 126
      %v1168 = vpop.permute.xlu0 %1167
      %1169 = vrot.lane.b32.xlu0 %v1131, 126
      %v1170 = vpop.permute.xlu0 %1169
      %1171 = vrot.lane.b32.xlu0 %v1132, 126
      %v1172 = vpop.permute.xlu0 %1171
      %1173 = vrot.lane.b32.xlu0 %v1133, 126
      %v1174 = vpop.permute.xlu0 %1173
      %1175 = vrot.lane.b32.xlu0 %v1134, 126
      %v1176 = vpop.permute.xlu0 %1175
      %v1177 = vsel %vm380, %v1166, %v1168
      %v1178 = vsel %vm380, %v1168, %v1170
      %v1179 = vsel %vm380, %v1172, %v1174
      %v1180 = vsel %vm380, %v1174, %v1176
      %1187 = vrot.lane.b32.xlu0 %v1129, 110
      %v1188 = vpop.permute.xlu0 %1187
      %1189 = vrot.lane.b32.xlu0 %v1130, 110
      %v1190 = vpop.permute.xlu0 %1189
      %1191 = vrot.lane.b32.xlu0 %v1131, 110
      %v1192 = vpop.permute.xlu0 %1191
      %1193 = vrot.lane.b32.xlu0 %v1132, 110
      %v1194 = vpop.permute.xlu0 %1193
      %1195 = vrot.lane.b32.xlu0 %v1133, 110
      %v1196 = vpop.permute.xlu0 %1195
      %1197 = vrot.lane.b32.xlu0 %v1134, 110
      %v1198 = vpop.permute.xlu0 %1197
      %v1199 = vsel %vm395, %v1188, %v1190
      %v1200 = vsel %vm395, %v1190, %v1192
      %v1201 = vsel %vm395, %v1194, %v1196
      %v1202 = vsel %vm395, %v1196, %v1198
      %1209 = vrot.lane.b32.xlu0 %v1129, 109
      %v1210 = vpop.permute.xlu0 %1209
      %1211 = vrot.lane.b32.xlu0 %v1130, 109
      %v1212 = vpop.permute.xlu0 %1211
      %1213 = vrot.lane.b32.xlu0 %v1131, 109
      %v1214 = vpop.permute.xlu0 %1213
      %1215 = vrot.lane.b32.xlu0 %v1132, 109
      %v1216 = vpop.permute.xlu0 %1215
      %1217 = vrot.lane.b32.xlu0 %v1133, 109
      %v1218 = vpop.permute.xlu0 %1217
      %1219 = vrot.lane.b32.xlu0 %v1134, 109
      %v1220 = vpop.permute.xlu0 %1219
      %v1221 = vsel %vm409, %v1210, %v1212
      %v1222 = vsel %vm409, %v1212, %v1214
      %v1223 = vsel %vm409, %v1216, %v1218
      %v1224 = vsel %vm409, %v1218, %v1220
      %1231 = vrot.lane.b32.xlu0 %v1129, 108
      %v1232 = vpop.permute.xlu0 %1231
      %1233 = vrot.lane.b32.xlu0 %v1130, 108
      %v1234 = vpop.permute.xlu0 %1233
      %1235 = vrot.lane.b32.xlu0 %v1131, 108
      %v1236 = vpop.permute.xlu0 %1235
      %1237 = vrot.lane.b32.xlu0 %v1132, 108
      %v1238 = vpop.permute.xlu0 %1237
      %1239 = vrot.lane.b32.xlu0 %v1133, 108
      %v1240 = vpop.permute.xlu0 %1239
      %1241 = vrot.lane.b32.xlu0 %v1134, 108
      %v1242 = vpop.permute.xlu0 %1241
      %v1243 = vsel %vm424, %v1232, %v1234
      %v1244 = vsel %vm424, %v1234, %v1236
      %v1245 = vsel %vm424, %v1238, %v1240
      %v1246 = vsel %vm424, %v1240, %v1242
      %1253 = vrot.lane.b32.xlu0 %v1129, 92
      %v1254 = vpop.permute.xlu0 %1253
      %1255 = vrot.lane.b32.xlu0 %v1130, 92
      %v1256 = vpop.permute.xlu0 %1255
      %1257 = vrot.lane.b32.xlu0 %v1131, 92
      %v1258 = vpop.permute.xlu0 %1257
      %1259 = vrot.lane.b32.xlu0 %v1132, 92
      %v1260 = vpop.permute.xlu0 %1259
      %1261 = vrot.lane.b32.xlu0 %v1133, 92
      %v1262 = vpop.permute.xlu0 %1261
      %1263 = vrot.lane.b32.xlu0 %v1134, 92
      %v1264 = vpop.permute.xlu0 %1263
      %v1265 = vsel %vm439, %v1254, %v1256
      %v1266 = vsel %vm439, %v1256, %v1258
      %v1267 = vsel %vm439, %v1260, %v1262
      %v1268 = vsel %vm439, %v1262, %v1264
      %1275 = vrot.lane.b32.xlu0 %v1129, 91
      %v1276 = vpop.permute.xlu0 %1275
      %1277 = vrot.lane.b32.xlu0 %v1130, 91
      %v1278 = vpop.permute.xlu0 %1277
      %1279 = vrot.lane.b32.xlu0 %v1131, 91
      %v1280 = vpop.permute.xlu0 %1279
      %1281 = vrot.lane.b32.xlu0 %v1132, 91
      %v1282 = vpop.permute.xlu0 %1281
      %1283 = vrot.lane.b32.xlu0 %v1133, 91
      %v1284 = vpop.permute.xlu0 %1283
      %1285 = vrot.lane.b32.xlu0 %v1134, 91
      %v1286 = vpop.permute.xlu0 %1285
      %v1287 = vsel %vm454, %v1276, %v1278
      %v1288 = vsel %vm454, %v1278, %v1280
      %v1289 = vsel %vm454, %v1282, %v1284
      %v1290 = vsel %vm454, %v1284, %v1286
      %1297 = vrot.lane.b32.xlu0 %v1129, 90
      %v1298 = vpop.permute.xlu0 %1297
      %1299 = vrot.lane.b32.xlu0 %v1130, 90
      %v1300 = vpop.permute.xlu0 %1299
      %1301 = vrot.lane.b32.xlu0 %v1131, 90
      %v1302 = vpop.permute.xlu0 %1301
      %1303 = vrot.lane.b32.xlu0 %v1132, 90
      %v1304 = vpop.permute.xlu0 %1303
      %1305 = vrot.lane.b32.xlu0 %v1133, 90
      %v1306 = vpop.permute.xlu0 %1305
      %1307 = vrot.lane.b32.xlu0 %v1134, 90
      %v1308 = vpop.permute.xlu0 %1307
      %v1309 = vsel %vm466, %v1298, %v1300
      %v1310 = vsel %vm466, %v1300, %v1302
      %v1311 = vsel %vm466, %v1304, %v1306
      %v1312 = vsel %vm466, %v1306, %v1308
      %1320 = vset.pattern.permute.xlu0 0
      %1321 = vperm.xlu0 %1320, %v1136
      %v1322 = vpop.permute.xlu0 %1321
      %v1325 = vcombine.high %v1135, %v1135
      %v1326 = vsel %vm924, %v1325, 0
      %1328 = vmatprep.subr.mxu0 %v1290
      %1329 = vmatpush1.msra.mxu0 %v1289
      %1330 = vmatprep.subr.mxu0 %v1288
      %1331 = vmatpush1.msra.mxu0 %v1287
      %1332 = vmatprep.subr.mxu0 %v1268
      %1333 = vmatpush1.msra.mxu0 %v1267
      %1334 = vmatprep.subr.mxu0 %v1266
      %1335 = vmatpush1.msra.mxu0 %v1265
      %1336 = vmatprep.subr.mxu0 %v1246
      %1337 = vmatpush1.msra.mxu0 %v1245
      %1338 = vmatprep.subr.mxu0 %v1244
      %1339 = vmatpush1.msra.mxu0 %v1243
      %1340 = vmatprep.subr.mxu0 %v1224
      %1341 = vmatpush1.msra.mxu0 %v1223
      %1342 = vmatprep.subr.mxu0 %v1222
      %1343 = vmatpush1.msra.mxu0 %v1221
      %1344 = vmatprep.subr.mxu0 %v1202
      %1345 = vmatpush1.msra.mxu0 %v1201
      %1346 = vmatprep.subr.mxu0 %v1200
      %1347 = vmatpush1.msra.mxu0 %v1199
      %1348 = vmatprep.subr.mxu0 %v1180
      %1349 = vmatpush1.msra.mxu0 %v1179
      %1350 = vmatprep.subr.mxu0 %v1178
      %1351 = vmatpush1.msra.mxu0 %v1177
      %1352 = vmatprep.subr.mxu0 %v1158
      %1353 = vmatpush1.msra.mxu0 %v1157
      %1354 = vmatprep.subr.mxu0 %v1156
      %1355 = vmatpush1.msra.mxu0 %v1155
      %1356 = vmatprep.subr.mxu0 %v1133
      %1357 = vmatpush1.msra.mxu0 %v1132
      %1358 = vmatprep.subr.mxu0 %v1130
      %1359 = vmatpush1.msra.mxu0 %v1129
      %1360 = vmatprep.subr.mxu0 0.0
      %1361 = vmatpush2.msra.mxu0 0.0
      %1362 = vmatprep.subr.mxu0 0.0
      %1363 = vmatpush2.msra.mxu0 0.0
      %1364 = vmatprep.subr.mxu0 0.0
      %1365 = vmatpush2.msra.mxu0 0.0
      %1366 = vmatprep.subr.mxu0 0.0
      %1367 = vmatpush2.msra.mxu0 0.0
      %1368 = vmatprep.subr.mxu0 0.0
      %1369 = vmatpush2.msra.mxu0 0.0
      %1370 = vmatprep.subr.mxu0 0.0
      %1371 = vmatpush2.msra.mxu0 0.0
      %1372 = vmatprep.subr.mxu0 0.0
      %1373 = vmatpush2.msra.mxu0 0.0
      %1374 = vmatprep.subr.mxu0 0.0
      %1375 = vmatpush2.msra.mxu0 0.0
      %1376 = vmatprep.subr.mxu0 0.0
      %1377 = vmatpush2.msra.mxu0 0.0
      %1378 = vmatprep.subr.mxu0 0.0
      %1379 = vmatpush2.msra.mxu0 0.0
      %1380 = vmatprep.subr.mxu0 0.0
      %1381 = vmatpush2.msra.mxu0 0.0
      %1382 = vmatprep.subr.mxu0 0.0
      %1383 = vmatpush2.msra.mxu0 0.0
      %1384 = vmatprep.subr.mxu0 0.0
      %1385 = vmatpush2.msra.mxu0 0.0
      %1386 = vmatprep.subr.mxu0 0.0
      %1387 = vmatpush2.msra.mxu0 0.0
      %1388 = vmatprep.subr.mxu0 %v1312
      %1389 = vmatpush2.msra.mxu0 %v1311
      %1390 = vmatprep.subr.mxu0 %v1310
      %1391 = vmatpush2.msra.mxu0 %v1309
      %1392 = vmatprep.mubr.f32.mxu0 %v1326
      %1393 = vmatmul.mubr.f32.gmra.mxu0 %v1135
      %v1394 = vpop.f32.mrf.mxu0
      %v1395 = vadd.f32 %v1322, %v1394
      %v1396 = vpop.f32.mrf.mxu0
      %v1397 = vadd.f32 %v1322, %v1396
      %1398 = vdwg.mxu0
      %1399 = vmatprep.subr.mxu0 0.0
      %1400 = vmatpush1.msra.mxu0 %v1286
      %1401 = vmatprep.subr.mxu0 0.0
      %1402 = vmatpush1.msra.mxu0 %v1280
      %1403 = vmatprep.subr.mxu0 0.0
      %1404 = vmatpush1.msra.mxu0 %v1264
      %1405 = vmatprep.subr.mxu0 0.0
      %1406 = vmatpush1.msra.mxu0 %v1258
      %1407 = vmatprep.subr.mxu0 0.0
      %1408 = vmatpush1.msra.mxu0 %v1242
      %1409 = vmatprep.subr.mxu0 0.0
      %1410 = vmatpush1.msra.mxu0 %v1236
      %1411 = vmatprep.subr.mxu0 0.0
      %1412 = vmatpush1.msra.mxu0 %v1220
      %1413 = vmatprep.subr.mxu0 0.0
      %1414 = vmatpush1.msra.mxu0 %v1214
      %1415 = vmatprep.subr.mxu0 0.0
      %1416 = vmatpush1.msra.mxu0 %v1198
      %1417 = vmatprep.subr.mxu0 0.0
      %1418 = vmatpush1.msra.mxu0 %v1192
      %1419 = vmatprep.subr.mxu0 0.0
      %1420 = vmatpush1.msra.mxu0 %v1176
      %1421 = vmatprep.subr.mxu0 0.0
      %1422 = vmatpush1.msra.mxu0 %v1170
      %1423 = vmatprep.subr.mxu0 0.0
      %1424 = vmatpush1.msra.mxu0 %v1154
      %1425 = vmatprep.subr.mxu0 0.0
      %1426 = vmatpush1.msra.mxu0 %v1148
      %1427 = vmatprep.subr.mxu0 0.0
      %1428 = vmatpush1.msra.mxu0 %v1134
      %1429 = vmatprep.subr.mxu0 0.0
      %1430 = vmatpush1.msra.mxu0 %v1131
      %1431 = vmatprep.subr.mxu0 0.0
      %1432 = vmatpush2.msra.mxu0 0.0
      %1433 = vmatprep.subr.mxu0 0.0
      %1434 = vmatpush2.msra.mxu0 0.0
      %1435 = vmatprep.subr.mxu0 0.0
      %1436 = vmatpush2.msra.mxu0 0.0
      %1437 = vmatprep.subr.mxu0 0.0
      %1438 = vmatpush2.msra.mxu0 0.0
      %1439 = vmatprep.subr.mxu0 0.0
      %1440 = vmatpush2.msra.mxu0 0.0
      %1441 = vmatprep.subr.mxu0 0.0
      %1442 = vmatpush2.msra.mxu0 0.0
      %1443 = vmatprep.subr.mxu0 0.0
      %1444 = vmatpush2.msra.mxu0 0.0
      %1445 = vmatprep.subr.mxu0 0.0
      %1446 = vmatpush2.msra.mxu0 0.0
      %1447 = vmatprep.subr.mxu0 0.0
      %1448 = vmatpush2.msra.mxu0 0.0
      %1449 = vmatprep.subr.mxu0 0.0
      %1450 = vmatpush2.msra.mxu0 0.0
      %1451 = vmatprep.subr.mxu0 0.0
      %1452 = vmatpush2.msra.mxu0 0.0
      %1453 = vmatprep.subr.mxu0 0.0
      %1454 = vmatpush2.msra.mxu0 0.0
      %1455 = vmatprep.subr.mxu0 0.0
      %1456 = vmatpush2.msra.mxu0 0.0
      %1457 = vmatprep.subr.mxu0 0.0
      %1458 = vmatpush2.msra.mxu0 0.0
      %1459 = vmatprep.subr.mxu0 0.0
      %1460 = vmatpush2.msra.mxu0 %v1308
      %1461 = vmatprep.subr.mxu0 0.0
      %1462 = vmatpush2.msra.mxu0 %v1302
      %1463 = vmatprep.mubr.f32.mxu0 %v1326
      %1464 = vmatmul.mubr.f32.gmra.mxu0 %v1135
      %v1465 = vpop.f32.mrf.mxu0
      %v1466 = vadd.f32 %v1322, %v1465
      %v1467 = vpop.f32.mrf.mxu0
      %1468 = vdwg.mxu0
      %v1471 = vcombine.low %v1395, %v1397
      %1473 = vst [vmem:[%s278] sm:$0x77] %v1471
      %vm1474 = vcmask 256000
      %1475 = vst.msk [vmem:[%s278 + $0x8] sm:$0x7] %vm1474, %v1466
      %p1476 = scmp.lt.s32.totalorder %s18, 1
      %s1477 = scalar_select %p1476, %s18, 1
      %s1478 = smul.addr %s1477, 3
      %s1479 = smul.addr %s1478, 4
      %s1480 = scalar_lea.vmem %s7, %s1479
      // Predicated region
      $region49: #{tonemapper_rgb_combine.1} parent=47 // pred_check
        %p1481 = pneg %p188
      $region50: #{tonemapper_rgb_combine.1} parent=47 // pred_check_branch
        %1483 = sbr.rel (%p1481) target = $region52
      $region51: #{tonemapper_rgb_combine.1} parent=47 // pred_region
        _
      $region52: #{tonemapper_rgb_combine.1} parent=47 // pred_fallthru
        _
    $region48: #{tonemapper_rgb_combine.1} parent=5 // pred_fallthru
      _
    %p1484 = scmp.le.s32.totalorder 2, %s13
    // Predicated region
    $region53: #{tonemapper_rgb_combine.1} parent=5 // pred_check
      %p1485 = pneg %p1484
    $region54: #{tonemapper_rgb_combine.1} parent=5 // pred_check_branch
      %1487 = sbr.rel (%p1485) target = $region56
    $region55: #{tonemapper_rgb_combine.1} parent=5 // pred_region
      %s1488 = ssub.s32 %s13, 2
      // Predicated region
      $region57: #{tonemapper_rgb_combine.1} parent=55 // pred_check
        %p1489 = pneg %p194
      $region58: #{tonemapper_rgb_combine.1} parent=55 // pred_check_branch
        %1491 = sbr.rel (%p1489) target = $region60
      $region59: #{tonemapper_rgb_combine.1} parent=55 // pred_region
        %p1492 = scmp.lt.s32.totalorder %s19, 1
        %s1493 = scalar_select %p1492, %s19, 1
        %s1494 = smul.addr %s1493, 3
        %s1495 = smul.addr %s1494, 4
        %s1496 = scalar_lea.vmem %s7, %s1495
      $region60: #{tonemapper_rgb_combine.1} parent=55 // pred_fallthru
        _
    $region56: #{tonemapper_rgb_combine.1} parent=5 // pred_fallthru
      _
  $region6: #{tonemapper_rgb_combine.1} parent=0 // loop_footer
    %s17 = sadd.s32 1, %s13
  $region7: #{tonemapper_rgb_combine.1} parent=0 // loop_footer_branch
    %12 = sbr.rel target = $region3
  $region8: #{tonemapper_rgb_combine.1} parent=0 // loop_exit
    _

</llo_original>
